<compile_context>
chip_gen: v7x
topology: tpu7x:2x2x1
jax: 0.10.0
libtpu: 0.0.40
codegen_flags: <defaults>
</compile_context>

<pallas_src>
import math
import functools

import jax
import jax.numpy as jnp
from jax.experimental import pallas as pl
from jax.experimental.pallas import tpu as pltpu


def _mha_kernel(head_count, d_k, d_v, with_attn,
                key_ref, value_ref, query_ref, mask_ref,
                wk_ref, bk_ref, wq_ref, bq_ref, wv_ref, bv_ref,
                wo_ref, bo_ref,
                *refs):
    """One grid step == (one batch element, one query tile).

    K/V projections are cached per batch element in VMEM scratch (grid axis 1
    is 'arbitrary', so for a fixed batch index the q tiles run in order on the
    same core and the cache stays valid).  Per tile: fused Q projection,
    batched per-head scores, additive masking, softmax, batched attn@V and one
    fused output projection.
    """
    if with_attn:
        out_ref, attn_ref, k_cache, v_cache = refs
    else:
        out_ref, k_cache, v_cache = refs
        attn_ref = None

    lk = k_cache.shape[-1]

    # ---------------- per-batch stage: runs only on the first q tile --------
    @pl.when(pl.program_id(1) == 0)
    def _():
        k = key_ref[0]                                    # (Lk, D)  bf16
        v = value_ref[0]                                  # (Lk, D)  bf16
        k_all = jnp.dot(k, wk_ref[...],
                        preferred_element_type=jnp.float32) + bk_ref[...]
        v_all = jnp.dot(v, wv_ref[...],
                        preferred_element_type=jnp.float32) + bv_ref[...]
        # K cache pre-transposed: one 2-D transpose + (tile-aligned when
        # d_k % 8 == 0) major-dim reshape per *batch*, so the per-tile score
        # matmul needs no per-head / per-step re-layout.
        k_cache[...] = k_all.T.reshape(head_count, d_k, lk).astype(jnp.bfloat16)
        # V cache per head: (H, Lk, d_v); built once per batch, amortized.
        for h in range(head_count):
            v_cache[h] = v_all[:, h * d_v:(h + 1) * d_v].astype(jnp.bfloat16)

    # ---------------- per-query-tile stage ----------------------------------
    q = query_ref[0]                                      # (Tq, D)  bf16
    # 1/sqrt(d_k) already folded into wq/bq by the wrapper.
    q_all = jnp.dot(q, wq_ref[...],
                    preferred_element_type=jnp.float32) + bq_ref[...]
    q_bf = q_all.astype(jnp.bfloat16)
    # (H, Tq, d_k): read-only slices stacked on a new leading axis (no masked
    # partial stores; the only narrow accesses left are reads).
    q_heads = jnp.stack(
        [q_bf[:, h * d_k:(h + 1) * d_k] for h in range(head_count)], axis=0)

    # One batched MXU matmul for all heads: (H,Tq,d_k) x (H,d_k,Lk) -> (H,Tq,Lk)
    scores = jnp.einsum("hqd,hdk->hqk", q_heads, k_cache[...],
                        preferred_element_type=jnp.float32)

    # Additive mask bias: scores are O(1), so scores + (-1e18) rounds to
    # exactly -1e18 in f32 == masked_fill(-1e18) in the reference.
    m = mask_ref[0]                                       # (1, Lk) or (Tq, Lk) int8
    scores = scores + m.astype(jnp.float32)[None, :, :] * jnp.float32(-1e18)

    # Batched softmax over keys; vector math kept in f32 (v5e-safe),
    # reciprocal on the EUP (approx) is ~free.
    smax = jnp.max(scores, axis=-1, keepdims=True)
    e = jnp.exp(scores - smax)
    p = e * pl.reciprocal(jnp.sum(e, axis=-1, keepdims=True), approx=True)

    if with_attn:
        attn_ref[0] = p                                   # single (H,Tq,Lk) store

    # Batched attn @ V: (H,Tq,Lk) x (H,Lk,d_v) -> (H,Tq,d_v); bf16 operands,
    # f32 accumulate.
    ctx = jnp.einsum("hqk,hkd->hqd", p.astype(jnp.bfloat16), v_cache[...],
                     preferred_element_type=jnp.float32)
    # Back to (Tq, H*d_v) with one lane-axis concat (no per-head scratch stores),
    # then one fused output projection.
    ctx_flat = jnp.concatenate([ctx[h] for h in range(head_count)],
                               axis=-1).astype(jnp.bfloat16)
    out_ref[0] = jnp.dot(ctx_flat, wo_ref[...],
                         preferred_element_type=jnp.float32) + bo_ref[...]


def _pick_q_tile(lq, row_bytes, budget_bytes=24 * 1024 * 1024):
    """Largest lane/sublane-friendly query tile whose f32 score/prob working
    set (~row_bytes per query row) stays within a VMEM budget."""
    if lq <= 64 or lq * row_bytes <= budget_bytes:
        return lq
    best = 0
    t = 8
    while t <= min(lq - 1, 512):
        if lq % t == 0 and t * row_bytes <= budget_bytes:
            best = t
        t += 8
    if best:
        return best
    # TODO(synk): pad Lq to a tileable length instead of a full-Lq block here.
    return lq


def _estimate_vmem_bytes(lk, d, tq, mq, h, dk, dv, with_attn):
    """Rough per-step VMEM footprint (double-buffered blocks + scratch +
    live f32 intermediates) used to size vmem_limit_bytes."""
    bf, f32 = 2, 4
    n = 0
    n += 2 * 2 * lk * d * bf                              # key + value blocks
    n += 2 * tq * d * bf                                  # query block
    n += 2 * mq * lk                                      # mask block (int8)
    n += 2 * bf * (2 * d * h * dk + d * h * dv + h * dv * d)   # weights
    n += 2 * f32 * (2 * h * dk + h * dv + d)              # biases
    n += 2 * tq * d * f32                                 # output block
    if with_attn:
        n += 2 * h * tq * lk * f32                        # attn block
    n += (h * dk * lk + h * lk * dv) * bf                 # K/V caches (scratch)
    n += 4 * h * tq * lk * f32                            # scores / exp / probs
    n += 4 * tq * h * max(dk, dv) * f32                   # q_all / ctx temps
    n += 2 * lk * h * max(dk, dv) * f32                   # k_all / v_all temps
    return n


def multi_headed_attention(key, value, query, mask, params, *,
                           head_count, d_k, d_v, with_attn=True, q_tile=None):
    """Pallas forward of MultiHeadedAttention (base path, eval mode).

    mask may be (B, Lq, Lk) or key-padding (B, 1, Lk); 1 -> masked.
    Returns (final_output (B, Lq, D), attn (B, H, Lq, Lk) or None, None).
    attn[:, h] corresponds to the PyTorch module's attn_per_head[h].
    """
    b, lk, d = key.shape
    lq = query.shape[1]
    assert mask.shape[0] == b and mask.shape[-1] == lk
    assert mask.shape[1] in (1, lq)
    mq = mask.shape[1]

    # PyTorch nn.Linear weights are (out, in); kernel wants (in, out).
    # 1/sqrt(d_k) is folded into the Q projection; all weights shipped bf16.
    scale = 1.0 / math.sqrt(d_k)
    bf16 = jnp.bfloat16
    wk_t = params["wk"].T.astype(bf16)                    # (D, H*d_k)
    wq_t = (params["wq"].T * scale).astype(bf16)          # (D, H*d_k), pre-scaled
    wv_t = params["wv"].T.astype(bf16)                    # (D, H*d_v)
    wo_t = params["wo"].T.astype(bf16)                    # (H*d_v, D)
    bk = params["bk"].reshape(1, -1).astype(jnp.float32)
    bq = (params["bq"] * scale).reshape(1, -1).astype(jnp.float32)
    bv = params["bv"].reshape(1, -1).astype(jnp.float32)
    bo = params["bo"].reshape(1, -1).astype(jnp.float32)

    key_bf = key.astype(bf16)
    value_bf = value.astype(bf16)
    query_bf = query.astype(bf16)
    mask_i8 = mask.astype(jnp.int8)

    row_bytes = head_count * lk * 4 * (4 if with_attn else 3) + 16 * d
    tq = q_tile if q_tile is not None else _pick_q_tile(lq, row_bytes)
    assert lq % tq == 0 and (tq == lq or tq % 8 == 0)
    n_q = lq // tq

    # Generation-aware VMEM limit derived from the actual block sizes.
    est = _estimate_vmem_bytes(lk, d, tq, mq, head_count, d_k, d_v, with_attn)
    try:
        vmem_cap = pltpu.get_tpu_info().vmem_capacity_bytes
    except Exception:  # pragma: no cover - conservative fallback (v7x floor)
        vmem_cap = 64 * 1024 * 1024
    vmem_limit = int(min(int(vmem_cap * 0.9),
                         max(32 * 1024 * 1024, (est * 3) // 2)))

    kernel = functools.partial(_mha_kernel, head_count, d_k, d_v, with_attn)

    def _full(x):
        shape = x.shape
        # Constant block index -> Mosaic only DMAs these once.
        return pl.BlockSpec(shape, lambda i, j: (0,) * len(shape))

    if mq == 1:
        mask_spec = pl.BlockSpec((1, 1, lk), lambda i, j: (i, 0, 0))
    else:
        mask_spec = pl.BlockSpec((1, tq, lk), lambda i, j: (i, j, 0))

    in_specs = [
        pl.BlockSpec((1, lk, d), lambda i, j: (i, 0, 0)),      # key   (per batch)
        pl.BlockSpec((1, lk, d), lambda i, j: (i, 0, 0)),      # value (per batch)
        pl.BlockSpec((1, tq, d), lambda i, j: (i, j, 0)),      # query (per tile)
        mask_spec,
        _full(wk_t), _full(bk), _full(wq_t), _full(bq),
        _full(wv_t), _full(bv), _full(wo_t), _full(bo),
    ]

    if with_attn:
        out_shape = (
            jax.ShapeDtypeStruct((b, lq, d), jnp.float32),
            jax.ShapeDtypeStruct((b, head_count, lq, lk), jnp.float32),
        )
        out_specs = [
            pl.BlockSpec((1, tq, d), lambda i, j: (i, j, 0)),
            pl.BlockSpec((1, head_count, tq, lk), lambda i, j: (i, 0, j, 0)),
        ]
    else:
        out_shape = jax.ShapeDtypeStruct((b, lq, d), jnp.float32)
        out_specs = pl.BlockSpec((1, tq, d), lambda i, j: (i, j, 0))

    scratch_shapes = [
        pltpu.VMEM((head_count, d_k, lk), jnp.bfloat16),       # K^T cache
        pltpu.VMEM((head_count, lk, d_v), jnp.bfloat16),       # V cache
    ]

    result = pl.pallas_call(
        kernel,
        out_shape=out_shape,
        grid_spec=pltpu.PrefetchScalarGridSpec(
            num_scalar_prefetch=0,
            grid=(b, n_q),
            in_specs=in_specs,
            out_specs=out_specs,
            scratch_shapes=scratch_shapes),
        compiler_params=pltpu.CompilerParams(
            # batch axis is megacore-shardable; the q-tile axis must stay
            # "arbitrary" so the per-batch K/V VMEM cache remains valid.
            dimension_semantics=("parallel", "arbitrary"),
            vmem_limit_bytes=vmem_limit),
    )(key_bf, value_bf, query_bf, mask_i8,
      wk_t, bk, wq_t, bq, wv_t, bv, wo_t, bo)

    if with_attn:
        out, attn = result
        return out, attn, None
    return result, None, None


def _reference(key, value, query, mask, params, *, head_count, d_k, d_v):
    """Pure-JAX reference mirroring the PyTorch forward (eval mode)."""
    b, lk, d = key.shape
    lq = query.shape[1]

    def lin(x, w, bias):
        return x @ w.T + bias

    def shape_(x, dim):
        return x.reshape(b, -1, head_count, dim).transpose(0, 2, 1, 3)

    k = shape_(lin(key, params["wk"], params["bk"]), d_k)     # (B,H,Lk,dk)
    v = shape_(lin(value, params["wv"], params["bv"]), d_v)   # (B,H,Lk,dv)
    q = shape_(lin(query, params["wq"], params["bq"]), d_k)   # (B,H,Lq,dk)

    q = q / math.sqrt(d_k)
    scores = jnp.einsum("bhqe,bhke->bhqk", q, k).astype(jnp.float32)
    m = jnp.broadcast_to(mask[:, None, :, :], scores.shape)
    scores = jnp.where(m > 0.5, jnp.float32(-1e18), scores)
    attn = jax.nn.softmax(scores, axis=-1)
    ctx = jnp.einsum("bhqk,bhkv->bhqv", attn, v)
    ctx = ctx.transpose(0, 2, 1, 3).reshape(b, lq, head_count * d_v)
    out = lin(ctx, params["wo"], params["bo"])
    return out, attn


if __name__ == "__main__":
    # Small shapes consistent with the module.
    B, LQ, LK = 2, 16, 8
    MODEL_DIM = 32
    HEADS, D_K, D_V = 4, 8, 8

    root = jax.random.PRNGKey(0)
    keys = jax.random.split(root, 8)

    key_in = jax.random.normal(keys[0], (B, LK, MODEL_DIM), jnp.float32)
    value_in = jax.random.normal(keys[1], (B, LK, MODEL_DIM), jnp.float32)
    query_in = jax.random.normal(keys[2], (B, LQ, MODEL_DIM), jnp.float32)

    # Deterministic padding-style mask: batch 0 sees all 8 keys, batch 1 only 6.
    key_lens = jnp.array([8, 6], dtype=jnp.int32)
    key_pos = jnp.arange(LK)[None, :]
    mask_kp = (key_pos >= key_lens[:, None]).astype(jnp.float32)[:, None, :]  # (B,1,LK)
    mask_full = jnp.broadcast_to(mask_kp, (B, LQ, LK))                        # (B,LQ,LK)

    def init_linear(k, out_dim, in_dim):
        # PyTorch nn.Linear default: U(-1/sqrt(in), 1/sqrt(in)) for W and b.
        kw, kb = jax.random.split(k)
        bound = 1.0 / math.sqrt(in_dim)
        w = jax.random.uniform(kw, (out_dim, in_dim), jnp.float32, -bound, bound)
        bias = jax.random.uniform(kb, (out_dim,), jnp.float32, -bound, bound)
        return w, bias

    wk, bk = init_linear(keys[3], HEADS * D_K, MODEL_DIM)
    wq, bq = init_linear(keys[4], HEADS * D_K, MODEL_DIM)
    wv, bv = init_linear(keys[5], HEADS * D_V, MODEL_DIM)
    wo, bo = init_linear(keys[6], MODEL_DIM, HEADS * D_V)
    params = dict(wk=wk, bk=bk, wq=wq, bq=bq, wv=wv, bv=bv, wo=wo, bo=bo)

    # Call 1: full (B,Lq,Lk) mask, attention returned, forced q_tile=8 so each
    # batch element runs 2 query tiles (exercises the per-batch K/V cache path).
    out, attn, coverage = multi_headed_attention(
        key_in, value_in, query_in, mask_full, params,
        head_count=HEADS, d_k=D_K, d_v=D_V, with_attn=True, q_tile=8)
    out = jax.block_until_ready(out)
    attn = jax.block_until_ready(attn)

    # Call 2: lean path — key-padding (B,1,Lk) mask, no attn writeback,
    # default query tile.
    out_na, attn_na, _ = multi_headed_attention(
        key_in, value_in, query_in, mask_kp, params,
        head_count=HEADS, d_k=D_K, d_v=D_V, with_attn=False)
    out_na = jax.block_until_ready(out_na)

    # Correctness vs a pure-JAX f32 reference of the PyTorch forward.
    # Tolerances account for bf16 matmul operands and the approx reciprocal.
    ref_out, ref_attn = _reference(key_in, value_in, query_in, mask_full, params,
                                   head_count=HEADS, d_k=D_K, d_v=D_V)
    assert out.shape == (B, LQ, MODEL_DIM)
    assert attn.shape == (B, HEADS, LQ, LK)
    assert jnp.allclose(out, ref_out, atol=5e-2, rtol=5e-2)
    assert jnp.allclose(attn, ref_attn, atol=1e-2, rtol=2e-2)
    assert jnp.allclose(out_na, out, atol=1e-4, rtol=1e-4)
    assert attn_na is None
    assert coverage is None

    print("KERNEL_OK")
</pallas_src>

<mosaic_0001>
module attributes {stable_mosaic.version = 11 : i64} {
  func.func @_mha_kernel(%arg0: i32, %arg1: i32, %arg2: memref<1x8x32xbf16, #tpu.memory_space<vmem>>, %arg3: memref<1x8x32xbf16, #tpu.memory_space<vmem>>, %arg4: memref<1x8x32xbf16, #tpu.memory_space<vmem>>, %arg5: memref<1x8x8xi8, #tpu.memory_space<vmem>>, %arg6: memref<32x32xbf16, #tpu.memory_space<vmem>>, %arg7: memref<1x32xf32, #tpu.memory_space<vmem>>, %arg8: memref<32x32xbf16, #tpu.memory_space<vmem>>, %arg9: memref<1x32xf32, #tpu.memory_space<vmem>>, %arg10: memref<32x32xbf16, #tpu.memory_space<vmem>>, %arg11: memref<1x32xf32, #tpu.memory_space<vmem>>, %arg12: memref<32x32xbf16, #tpu.memory_space<vmem>>, %arg13: memref<1x32xf32, #tpu.memory_space<vmem>>, %arg14: memref<1x8x32xf32, #tpu.memory_space<vmem>>, %arg15: memref<1x4x8x8xf32, #tpu.memory_space<vmem>>, %arg16: memref<4x8x8xbf16, #tpu.memory_space<vmem>>, %arg17: memref<4x8x8xbf16, #tpu.memory_space<vmem>>) attributes {dimension_semantics = [#tpu.dimension_semantics<parallel>, #tpu.dimension_semantics<arbitrary>], iteration_bounds = array<i64: 2, 2>, scalar_prefetch = 0 : i64, scratch_operands = 2 : i64, tpu.core_type = #tpu.core_type<tc>, window_params = [{transform_indices = @transform_0, window_bounds = array<i64: 1, 8, 32>}, {transform_indices = @transform_1, window_bounds = array<i64: 1, 8, 32>}, {transform_indices = @transform_2, window_bounds = array<i64: 1, 8, 32>}, {transform_indices = @transform_3, window_bounds = array<i64: 1, 8, 8>}, {pipeline_mode = #tpu.pipeline_mode<synchronous>, transform_indices = @transform_4, window_bounds = array<i64: 32, 32>}, {pipeline_mode = #tpu.pipeline_mode<synchronous>, transform_indices = @transform_5, window_bounds = array<i64: 1, 32>}, {pipeline_mode = #tpu.pipeline_mode<synchronous>, transform_indices = @transform_6, window_bounds = array<i64: 32, 32>}, {pipeline_mode = #tpu.pipeline_mode<synchronous>, transform_indices = @transform_7, window_bounds = array<i64: 1, 32>}, {pipeline_mode = #tpu.pipeline_mode<synchronous>, transform_indices = @transform_8, window_bounds = array<i64: 32, 32>}, {pipeline_mode = #tpu.pipeline_mode<synchronous>, transform_indices = @transform_9, window_bounds = array<i64: 1, 32>}, {pipeline_mode = #tpu.pipeline_mode<synchronous>, transform_indices = @transform_10, window_bounds = array<i64: 32, 32>}, {pipeline_mode = #tpu.pipeline_mode<synchronous>, transform_indices = @transform_11, window_bounds = array<i64: 1, 32>}, {transform_indices = @transform_12, window_bounds = array<i64: 1, 8, 32>}, {transform_indices = @transform_13, window_bounds = array<i64: 1, 4, 8, 8>}]} {
    %c0_i32 = arith.constant 0 : i32
    %0 = arith.cmpi eq, %arg1, %c0_i32 : i32
    %1 = arith.extui %0 : i1 to i32
    %c0_i32_0 = arith.constant 0 : i32
    %2 = arith.cmpi ne, %1, %c0_i32_0 : i32
    scf.if %2 {
      %c0_33 = arith.constant 0 : index
      %c0_34 = arith.constant 0 : index
      %c0_35 = arith.constant 0 : index
      %64 = vector.load %arg2[%c0_33, %c0_34, %c0_35] : memref<1x8x32xbf16, #tpu.memory_space<vmem>>, vector<1x8x32xbf16>
      %65 = vector.shape_cast %64 : vector<1x8x32xbf16> to vector<8x32xbf16>
      %c0_36 = arith.constant 0 : index
      %c0_37 = arith.constant 0 : index
      %c0_38 = arith.constant 0 : index
      %66 = vector.load %arg3[%c0_36, %c0_37, %c0_38] : memref<1x8x32xbf16, #tpu.memory_space<vmem>>, vector<1x8x32xbf16>
      %67 = vector.shape_cast %66 : vector<1x8x32xbf16> to vector<8x32xbf16>
      %c0_39 = arith.constant 0 : index
      %c0_40 = arith.constant 0 : index
      %68 = vector.load %arg6[%c0_39, %c0_40] : memref<32x32xbf16, #tpu.memory_space<vmem>>, vector<32x32xbf16>
      %cst_41 = arith.constant dense<0.000000e+00> : vector<8x32xf32>
      %69 = tpu.matmul %65, %68, %cst_41 {dimension_numbers = #tpu.dot_dimension_numbers<[1], [0], [0], [1], [0, 0, 1, 1], [], []>} : vector<8x32xbf16>, vector<32x32xbf16>, vector<8x32xf32> -> vector<8x32xf32>
      %c0_42 = arith.constant 0 : index
      %c0_43 = arith.constant 0 : index
      %70 = vector.load %arg7[%c0_42, %c0_43] : memref<1x32xf32, #tpu.memory_space<vmem>>, vector<1x32xf32>
      %71 = vector.broadcast %70 : vector<1x32xf32> to vector<8x32xf32>
      %72 = arith.addf %69, %71 : vector<8x32xf32>
      %c0_44 = arith.constant 0 : index
      %c0_45 = arith.constant 0 : index
      %73 = vector.load %arg10[%c0_44, %c0_45] : memref<32x32xbf16, #tpu.memory_space<vmem>>, vector<32x32xbf16>
      %cst_46 = arith.constant dense<0.000000e+00> : vector<8x32xf32>
      %74 = tpu.matmul %67, %73, %cst_46 {dimension_numbers = #tpu.dot_dimension_numbers<[1], [0], [0], [1], [0, 0, 1, 1], [], []>} : vector<8x32xbf16>, vector<32x32xbf16>, vector<8x32xf32> -> vector<8x32xf32>
      %c0_47 = arith.constant 0 : index
      %c0_48 = arith.constant 0 : index
      %75 = vector.load %arg11[%c0_47, %c0_48] : memref<1x32xf32, #tpu.memory_space<vmem>>, vector<1x32xf32>
      %76 = vector.broadcast %75 : vector<1x32xf32> to vector<8x32xf32>
      %77 = arith.addf %74, %76 : vector<8x32xf32>
      %78 = tpu.transpose %72, [1, 0] : vector<8x32xf32> -> vector<32x8xf32>
      %79 = vector.shape_cast %78 : vector<32x8xf32> to vector<4x8x8xf32>
      %80 = arith.truncf %79 : vector<4x8x8xf32> to vector<4x8x8xbf16>
      %c0_49 = arith.constant 0 : index
      %c0_50 = arith.constant 0 : index
      %c0_51 = arith.constant 0 : index
      %81 = vector.load %arg16[%c0_49, %c0_50, %c0_51] : memref<4x8x8xbf16, #tpu.memory_space<vmem>>, vector<4x8x8xbf16>
      tpu.vector_store %arg16[%c0_49, %c0_50, %c0_51], %80 {strides = array<i32>} : memref<4x8x8xbf16, #tpu.memory_space<vmem>>, vector<4x8x8xbf16>,
      %82 = vector.extract_strided_slice %77 {offsets = [0, 0], sizes = [8, 8], strides = [1, 1]} : vector<8x32xf32> to vector<8x8xf32>
      %83 = arith.truncf %82 : vector<8x8xf32> to vector<8x8xbf16>
      %c0_52 = arith.constant 0 : index
      %c0_53 = arith.constant 0 : index
      %c0_54 = arith.constant 0 : index
      %84 = vector.load %arg17[%c0_52, %c0_53, %c0_54] : memref<4x8x8xbf16, #tpu.memory_space<vmem>>, vector<1x8x8xbf16>
      %85 = vector.shape_cast %84 : vector<1x8x8xbf16> to vector<8x8xbf16>
      %86 = vector.shape_cast %83 : vector<8x8xbf16> to vector<1x8x8xbf16>
      tpu.vector_store %arg17[%c0_52, %c0_53, %c0_54], %86 {strides = array<i32>} : memref<4x8x8xbf16, #tpu.memory_space<vmem>>, vector<1x8x8xbf16>,
      %87 = vector.extract_strided_slice %77 {offsets = [0, 8], sizes = [8, 8], strides = [1, 1]} : vector<8x32xf32> to vector<8x8xf32>
      %88 = arith.truncf %87 : vector<8x8xf32> to vector<8x8xbf16>
      %c1 = arith.constant 1 : index
      %c0_55 = arith.constant 0 : index
      %c0_56 = arith.constant 0 : index
      %89 = vector.load %arg17[%c1, %c0_55, %c0_56] : memref<4x8x8xbf16, #tpu.memory_space<vmem>>, vector<1x8x8xbf16>
      %90 = vector.shape_cast %89 : vector<1x8x8xbf16> to vector<8x8xbf16>
      %91 = vector.shape_cast %88 : vector<8x8xbf16> to vector<1x8x8xbf16>
      tpu.vector_store %arg17[%c1, %c0_55, %c0_56], %91 {strides = array<i32>} : memref<4x8x8xbf16, #tpu.memory_space<vmem>>, vector<1x8x8xbf16>,
      %92 = vector.extract_strided_slice %77 {offsets = [0, 16], sizes = [8, 8], strides = [1, 1]} : vector<8x32xf32> to vector<8x8xf32>
      %93 = arith.truncf %92 : vector<8x8xf32> to vector<8x8xbf16>
      %c2 = arith.constant 2 : index
      %c0_57 = arith.constant 0 : index
      %c0_58 = arith.constant 0 : index
      %94 = vector.load %arg17[%c2, %c0_57, %c0_58] : memref<4x8x8xbf16, #tpu.memory_space<vmem>>, vector<1x8x8xbf16>
      %95 = vector.shape_cast %94 : vector<1x8x8xbf16> to vector<8x8xbf16>
      %96 = vector.shape_cast %93 : vector<8x8xbf16> to vector<1x8x8xbf16>
      tpu.vector_store %arg17[%c2, %c0_57, %c0_58], %96 {strides = array<i32>} : memref<4x8x8xbf16, #tpu.memory_space<vmem>>, vector<1x8x8xbf16>,
      %97 = vector.extract_strided_slice %77 {offsets = [0, 24], sizes = [8, 8], strides = [1, 1]} : vector<8x32xf32> to vector<8x8xf32>
      %98 = arith.truncf %97 : vector<8x8xf32> to vector<8x8xbf16>
      %c3 = arith.constant 3 : index
      %c0_59 = arith.constant 0 : index
      %c0_60 = arith.constant 0 : index
      %99 = vector.load %arg17[%c3, %c0_59, %c0_60] : memref<4x8x8xbf16, #tpu.memory_space<vmem>>, vector<1x8x8xbf16>
      %100 = vector.shape_cast %99 : vector<1x8x8xbf16> to vector<8x8xbf16>
      %101 = vector.shape_cast %98 : vector<8x8xbf16> to vector<1x8x8xbf16>
      tpu.vector_store %arg17[%c3, %c0_59, %c0_60], %101 {strides = array<i32>} : memref<4x8x8xbf16, #tpu.memory_space<vmem>>, vector<1x8x8xbf16>,
    } else {
    }
    %c0 = arith.constant 0 : index
    %c0_1 = arith.constant 0 : index
    %c0_2 = arith.constant 0 : index
    %3 = vector.load %arg4[%c0, %c0_1, %c0_2] : memref<1x8x32xbf16, #tpu.memory_space<vmem>>, vector<1x8x32xbf16>
    %4 = vector.shape_cast %3 : vector<1x8x32xbf16> to vector<8x32xbf16>
    %c0_3 = arith.constant 0 : index
    %c0_4 = arith.constant 0 : index
    %5 = vector.load %arg8[%c0_3, %c0_4] : memref<32x32xbf16, #tpu.memory_space<vmem>>, vector<32x32xbf16>
    %cst = arith.constant dense<0.000000e+00> : vector<8x32xf32>
    %6 = tpu.matmul %4, %5, %cst {dimension_numbers = #tpu.dot_dimension_numbers<[1], [0], [0], [1], [0, 0, 1, 1], [], []>} : vector<8x32xbf16>, vector<32x32xbf16>, vector<8x32xf32> -> vector<8x32xf32>
    %c0_5 = arith.constant 0 : index
    %c0_6 = arith.constant 0 : index
    %7 = vector.load %arg9[%c0_5, %c0_6] : memref<1x32xf32, #tpu.memory_space<vmem>>, vector<1x32xf32>
    %8 = vector.broadcast %7 : vector<1x32xf32> to vector<8x32xf32>
    %9 = arith.addf %6, %8 : vector<8x32xf32>
    %10 = arith.truncf %9 : vector<8x32xf32> to vector<8x32xbf16>
    %11 = vector.extract_strided_slice %10 {offsets = [0, 0], sizes = [8, 8], strides = [1, 1]} : vector<8x32xbf16> to vector<8x8xbf16>
    %12 = vector.extract_strided_slice %10 {offsets = [0, 8], sizes = [8, 8], strides = [1, 1]} : vector<8x32xbf16> to vector<8x8xbf16>
    %13 = vector.extract_strided_slice %10 {offsets = [0, 16], sizes = [8, 8], strides = [1, 1]} : vector<8x32xbf16> to vector<8x8xbf16>
    %14 = vector.extract_strided_slice %10 {offsets = [0, 24], sizes = [8, 8], strides = [1, 1]} : vector<8x32xbf16> to vector<8x8xbf16>
    %15 = vector.shape_cast %11 : vector<8x8xbf16> to vector<1x8x8xbf16>
    %16 = vector.shape_cast %12 : vector<8x8xbf16> to vector<1x8x8xbf16>
    %17 = vector.shape_cast %13 : vector<8x8xbf16> to vector<1x8x8xbf16>
    %18 = vector.shape_cast %14 : vector<8x8xbf16> to vector<1x8x8xbf16>
    %19 = tpu.concatenate %15, %16, %17, %18 in 0 : vector<1x8x8xbf16>, vector<1x8x8xbf16>, vector<1x8x8xbf16>, vector<1x8x8xbf16> -> vector<4x8x8xbf16>
    %c0_7 = arith.constant 0 : index
    %c0_8 = arith.constant 0 : index
    %c0_9 = arith.constant 0 : index
    %20 = vector.load %arg16[%c0_7, %c0_8, %c0_9] : memref<4x8x8xbf16, #tpu.memory_space<vmem>>, vector<4x8x8xbf16>
    "tpu.trace_start"() <{level = 10 : i32, message = "hqd,hdk->hqk"}> : () -> ()
    %cst_10 = arith.constant dense<0.000000e+00> : vector<4x8x8xf32>
    %21 = tpu.matmul %19, %20, %cst_10 {dimension_numbers = #tpu.dot_dimension_numbers<[2], [1], [1], [2], [0, 0, 0, 1, 1, 2], [0], [0]>} : vector<4x8x8xbf16>, vector<4x8x8xbf16>, vector<4x8x8xf32> -> vector<4x8x8xf32>
    "tpu.trace_stop"() : () -> ()
    %c0_11 = arith.constant 0 : index
    %c0_12 = arith.constant 0 : index
    %c0_13 = arith.constant 0 : index
    %22 = vector.load %arg5[%c0_11, %c0_12, %c0_13] : memref<1x8x8xi8, #tpu.memory_space<vmem>>, vector<1x8x8xi8>
    %23 = vector.shape_cast %22 : vector<1x8x8xi8> to vector<8x8xi8>
    %24 = arith.sitofp %23 : vector<8x8xi8> to vector<8x8xf32>
    %25 = vector.shape_cast %24 : vector<8x8xf32> to vector<1x8x8xf32>
    %cst_14 = arith.constant -9.99999984E+17 : f32
    %26 = vector.broadcast %cst_14 : f32 to vector<1x8x8xf32>
    %27 = arith.mulf %25, %26 : vector<1x8x8xf32>
    %28 = vector.broadcast %27 : vector<1x8x8xf32> to vector<4x8x8xf32>
    %29 = arith.addf %21, %28 : vector<4x8x8xf32>
    %cst_15 = arith.constant dense<0xFF800000> : vector<4x8xf32>
    %30 = vector.multi_reduction <maximumf>, %29, %cst_15 [2] : vector<4x8x8xf32> to vector<4x8xf32>
    %31 = vector.shape_cast %30 : vector<4x8xf32> to vector<4x8x1xf32>
    %32 = vector.broadcast %31 : vector<4x8x1xf32> to vector<4x8x8xf32>
    %33 = arith.subf %29, %32 : vector<4x8x8xf32>
    %34 = math.exp %33 : vector<4x8x8xf32>
    %cst_16 = arith.constant dense<0.000000e+00> : vector<4x8xf32>
    %35 = vector.multi_reduction <add>, %34, %cst_16 [2] : vector<4x8x8xf32> to vector<4x8xf32>
    %36 = vector.shape_cast %35 : vector<4x8xf32> to vector<4x8x1xf32>
    %37 = tpu.reciprocal %36 {approx = true} : vector<4x8x1xf32> -> vector<4x8x1xf32>
    %38 = vector.broadcast %37 : vector<4x8x1xf32> to vector<4x8x8xf32>
    %39 = arith.mulf %34, %38 : vector<4x8x8xf32>
    %c0_17 = arith.constant 0 : index
    %c0_18 = arith.constant 0 : index
    %c0_19 = arith.constant 0 : index
    %c0_20 = arith.constant 0 : index
    %40 = vector.load %arg15[%c0_17, %c0_18, %c0_19, %c0_20] : memref<1x4x8x8xf32, #tpu.memory_space<vmem>>, vector<1x4x8x8xf32>
    %41 = vector.shape_cast %40 : vector<1x4x8x8xf32> to vector<4x8x8xf32>
    %42 = vector.shape_cast %39 : vector<4x8x8xf32> to vector<1x4x8x8xf32>
    tpu.vector_store %arg15[%c0_17, %c0_18, %c0_19, %c0_20], %42 {strides = array<i32>} : memref<1x4x8x8xf32, #tpu.memory_space<vmem>>, vector<1x4x8x8xf32>,
    %43 = arith.truncf %39 : vector<4x8x8xf32> to vector<4x8x8xbf16>
    %c0_21 = arith.constant 0 : index
    %c0_22 = arith.constant 0 : index
    %c0_23 = arith.constant 0 : index
    %44 = vector.load %arg17[%c0_21, %c0_22, %c0_23] : memref<4x8x8xbf16, #tpu.memory_space<vmem>>, vector<4x8x8xbf16>
    "tpu.trace_start"() <{level = 10 : i32, message = "hqk,hkd->hqd"}> : () -> ()
    %cst_24 = arith.constant dense<0.000000e+00> : vector<4x8x8xf32>
    %45 = tpu.matmul %43, %44, %cst_24 {dimension_numbers = #tpu.dot_dimension_numbers<[2], [1], [1], [2], [0, 0, 0, 1, 1, 2], [0], [0]>} : vector<4x8x8xbf16>, vector<4x8x8xbf16>, vector<4x8x8xf32> -> vector<4x8x8xf32>
    "tpu.trace_stop"() : () -> ()
    %46 = vector.extract_strided_slice %45 {offsets = [0, 0, 0], sizes = [1, 8, 8], strides = [1, 1, 1]} : vector<4x8x8xf32> to vector<1x8x8xf32>
    %47 = vector.shape_cast %46 : vector<1x8x8xf32> to vector<8x8xf32>
    %48 = vector.extract_strided_slice %45 {offsets = [1, 0, 0], sizes = [1, 8, 8], strides = [1, 1, 1]} : vector<4x8x8xf32> to vector<1x8x8xf32>
    %49 = vector.shape_cast %48 : vector<1x8x8xf32> to vector<8x8xf32>
    %50 = vector.extract_strided_slice %45 {offsets = [2, 0, 0], sizes = [1, 8, 8], strides = [1, 1, 1]} : vector<4x8x8xf32> to vector<1x8x8xf32>
    %51 = vector.shape_cast %50 : vector<1x8x8xf32> to vector<8x8xf32>
    %52 = vector.extract_strided_slice %45 {offsets = [3, 0, 0], sizes = [1, 8, 8], strides = [1, 1, 1]} : vector<4x8x8xf32> to vector<1x8x8xf32>
    %53 = vector.shape_cast %52 : vector<1x8x8xf32> to vector<8x8xf32>
    %54 = tpu.concatenate %47, %49, %51, %53 in 1 : vector<8x8xf32>, vector<8x8xf32>, vector<8x8xf32>, vector<8x8xf32> -> vector<8x32xf32>
    %55 = arith.truncf %54 : vector<8x32xf32> to vector<8x32xbf16>
    %c0_25 = arith.constant 0 : index
    %c0_26 = arith.constant 0 : index
    %56 = vector.load %arg12[%c0_25, %c0_26] : memref<32x32xbf16, #tpu.memory_space<vmem>>, vector<32x32xbf16>
    %cst_27 = arith.constant dense<0.000000e+00> : vector<8x32xf32>
    %57 = tpu.matmul %55, %56, %cst_27 {dimension_numbers = #tpu.dot_dimension_numbers<[1], [0], [0], [1], [0, 0, 1, 1], [], []>} : vector<8x32xbf16>, vector<32x32xbf16>, vector<8x32xf32> -> vector<8x32xf32>
    %c0_28 = arith.constant 0 : index
    %c0_29 = arith.constant 0 : index
    %58 = vector.load %arg13[%c0_28, %c0_29] : memref<1x32xf32, #tpu.memory_space<vmem>>, vector<1x32xf32>
    %59 = vector.broadcast %58 : vector<1x32xf32> to vector<8x32xf32>
    %60 = arith.addf %57, %59 : vector<8x32xf32>
    %c0_30 = arith.constant 0 : index
    %c0_31 = arith.constant 0 : index
    %c0_32 = arith.constant 0 : index
    %61 = vector.load %arg14[%c0_30, %c0_31, %c0_32] : memref<1x8x32xf32, #tpu.memory_space<vmem>>, vector<1x8x32xf32>
    %62 = vector.shape_cast %61 : vector<1x8x32xf32> to vector<8x32xf32>
    %63 = vector.shape_cast %60 : vector<8x32xf32> to vector<1x8x32xf32>
    tpu.vector_store %arg14[%c0_30, %c0_31, %c0_32], %63 {strides = array<i32>} : memref<1x8x32xf32, #tpu.memory_space<vmem>>, vector<1x8x32xf32>,
    return
  }
  func.func @transform_0(%arg0: i32, %arg1: i32) -> (i32, i32, i32) {
    %c0_i32 = arith.constant 0 : i32
    %c0_i32_0 = arith.constant 0 : i32
    %c0_i32_1 = arith.constant 0 : i32
    return %arg0, %c0_i32, %c0_i32_0 : i32, i32, i32
  }
  func.func @transform_1(%arg0: i32, %arg1: i32) -> (i32, i32, i32) {
    %c0_i32 = arith.constant 0 : i32
    %c0_i32_0 = arith.constant 0 : i32
    %c0_i32_1 = arith.constant 0 : i32
    return %arg0, %c0_i32, %c0_i32_0 : i32, i32, i32
  }
  func.func @transform_2(%arg0: i32, %arg1: i32) -> (i32, i32, i32) {
    %c0_i32 = arith.constant 0 : i32
    %c0_i32_0 = arith.constant 0 : i32
    return %arg0, %arg1, %c0_i32 : i32, i32, i32
  }
  func.func @transform_3(%arg0: i32, %arg1: i32) -> (i32, i32, i32) {
    %c0_i32 = arith.constant 0 : i32
    %c0_i32_0 = arith.constant 0 : i32
    return %arg0, %arg1, %c0_i32 : i32, i32, i32
  }
  func.func @transform_4(%arg0: i32, %arg1: i32) -> (i32, i32) {
    %c0_i32 = arith.constant 0 : i32
    %c0_i32_0 = arith.constant 0 : i32
    %c0_i32_1 = arith.constant 0 : i32
    return %c0_i32, %c0_i32_0 : i32, i32
  }
  func.func @transform_5(%arg0: i32, %arg1: i32) -> (i32, i32) {
    %c0_i32 = arith.constant 0 : i32
    %c0_i32_0 = arith.constant 0 : i32
    %c0_i32_1 = arith.constant 0 : i32
    return %c0_i32, %c0_i32_0 : i32, i32
  }
  func.func @transform_6(%arg0: i32, %arg1: i32) -> (i32, i32) {
    %c0_i32 = arith.constant 0 : i32
    %c0_i32_0 = arith.constant 0 : i32
    %c0_i32_1 = arith.constant 0 : i32
    return %c0_i32, %c0_i32_0 : i32, i32
  }
  func.func @transform_7(%arg0: i32, %arg1: i32) -> (i32, i32) {
    %c0_i32 = arith.constant 0 : i32
    %c0_i32_0 = arith.constant 0 : i32
    %c0_i32_1 = arith.constant 0 : i32
    return %c0_i32, %c0_i32_0 : i32, i32
  }
  func.func @transform_8(%arg0: i32, %arg1: i32) -> (i32, i32) {
    %c0_i32 = arith.constant 0 : i32
    %c0_i32_0 = arith.constant 0 : i32
    %c0_i32_1 = arith.constant 0 : i32
    return %c0_i32, %c0_i32_0 : i32, i32
  }
  func.func @transform_9(%arg0: i32, %arg1: i32) -> (i32, i32) {
    %c0_i32 = arith.constant 0 : i32
    %c0_i32_0 = arith.constant 0 : i32
    %c0_i32_1 = arith.constant 0 : i32
    return %c0_i32, %c0_i32_0 : i32, i32
  }
  func.func @transform_10(%arg0: i32, %arg1: i32) -> (i32, i32) {
    %c0_i32 = arith.constant 0 : i32
    %c0_i32_0 = arith.constant 0 : i32
    %c0_i32_1 = arith.constant 0 : i32
    return %c0_i32, %c0_i32_0 : i32, i32
  }
  func.func @transform_11(%arg0: i32, %arg1: i32) -> (i32, i32) {
    %c0_i32 = arith.constant 0 : i32
    %c0_i32_0 = arith.constant 0 : i32
    %c0_i32_1 = arith.constant 0 : i32
    return %c0_i32, %c0_i32_0 : i32, i32
  }
  func.func @transform_12(%arg0: i32, %arg1: i32) -> (i32, i32, i32) {
    %c0_i32 = arith.constant 0 : i32
    %c0_i32_0 = arith.constant 0 : i32
    return %arg0, %arg1, %c0_i32 : i32, i32, i32
  }
  func.func @transform_13(%arg0: i32, %arg1: i32) -> (i32, i32, i32, i32) {
    %c0_i32 = arith.constant 0 : i32
    %c0_i32_0 = arith.constant 0 : i32
    %c0_i32_1 = arith.constant 0 : i32
    return %arg0, %c0_i32, %arg1, %c0_i32_0 : i32, i32, i32, i32
  }
}

</mosaic_0001>

<llo_original>
// kernel: tpu_custom_call.1
$region0: #{tpu_custom_call.1}
  #allocation0 [shape = 'u32[]', space=smem, size = 0x4, offset = 0x4, fixed_abs, tag = 'smem constant byte address 0x4 - core index']
  #allocation1 [shape = 'u32[144,128]{1,0:T(1,128)}', space=vmem, size = 0x12000, scoped, tag = 'internal scratch']
  #allocation2 [shape = 'bf16[4,8,8]{2,1,0:T(8,128)(2,1)}', space=vmem, size = 0x2000, scoped, tag = 'scratch operand']
  #allocation3 [shape = 'bf16[4,8,8]{2,1,0:T(8,128)(2,1)}', space=vmem, size = 0x2000, scoped, tag = 'scratch operand']
  %s0 = inlined_call_operand.hbm [shape: bf16[2,8,32], index: 0, kind: input, shape index: {}]
  %s1 = inlined_call_operand.hbm [shape: bf16[2,8,32], index: 1, kind: input, shape index: {}]
  %s2 = inlined_call_operand.vmem [shape: bf16[2,16,32], index: 2, kind: input, shape index: {}]
  %s3 = inlined_call_operand.vmem [shape: s8[2,16,8], index: 3, kind: input, shape index: {}]
  %s4 = inlined_call_operand.hbm [shape: bf16[32,32], index: 4, kind: input, shape index: {}]
  %s5 = inlined_call_operand.vmem [shape: f32[1,32], index: 5, kind: input, shape index: {}]
  %s6 = inlined_call_operand.vmem [shape: bf16[32,32], index: 6, kind: input, shape index: {}]
  %s7 = inlined_call_operand.hbm [shape: f32[1,32], index: 7, kind: input, shape index: {}]
  %s8 = inlined_call_operand.hbm [shape: bf16[32,32], index: 8, kind: input, shape index: {}]
  %s9 = inlined_call_operand.hbm [shape: f32[1,32], index: 9, kind: input, shape index: {}]
  %s10 = inlined_call_operand.vmem [shape: bf16[32,32], index: 10, kind: input, shape index: {}]
  %s11 = inlined_call_operand.vmem [shape: f32[1,32], index: 11, kind: input, shape index: {}]
  %s12 = inlined_call_operand.hbm [shape: f32[2,16,32], index: 12, kind: output, shape index: {0}]
  %s13 = inlined_call_operand.vmem [shape: f32[2,4,16,8], index: 13, kind: output, shape index: {1}]
  %14 = xla_tuple %s12, %s13
  %s15 = sld [smem:[#allocation0]]
  $region151: #{tpu_custom_call.1} parent=0
    _
  %s17 = ssub.s32 1, %s15
  %s18 = scalar_select 0, %s17, %s15
  $region1: #{tpu_custom_call.1} parent=0
    #allocation4 [shape = 'u8[4096]{0}', space=vmem, size = 0x1000, scoped, tag = 'input window, operand 0']
    #allocation5 [shape = 's32[2]{0}', space=sflag, size = 0x8, scoped, tag = 'scoped memory for tpu_custom_call.1']
    #allocation6 [shape = 's32[2]{0}', space=sflag, size = 0x8, scoped, tag = 'scoped memory for tpu_custom_call.1']
    #allocation7 [shape = 'u8[4096]{0}', space=vmem, size = 0x1000, scoped, tag = 'input window, operand 1']
    #allocation8 [shape = 's32[2]{0}', space=sflag, size = 0x8, scoped, tag = 'scoped memory for tpu_custom_call.1']
    #allocation9 [shape = 'u8[8192]{0}', space=vmem, size = 0x2000, scoped, tag = 'input window, operand 4, single buffered']
    #allocation10 [shape = 'u8[512]{0}', space=vmem, size = 0x400, scoped, tag = 'input window, operand 7, single buffered']
    #allocation11 [shape = 's32[1]{0}', space=sflag, size = 0x4, scoped, tag = 'scoped memory for tpu_custom_call.1']
    #allocation12 [shape = 'u8[8192]{0}', space=vmem, size = 0x2000, scoped, tag = 'input window, operand 8, single buffered']
    #allocation13 [shape = 'u8[512]{0}', space=vmem, size = 0x400, scoped, tag = 'input window, operand 9, single buffered']
    #allocation14 [shape = 's32[1]{0}', space=sflag, size = 0x4, scoped, tag = 'scoped memory for tpu_custom_call.1']
    #allocation15 [shape = 'u8[8192]{0}', space=vmem, size = 0x2000, scoped, tag = 'output window, operand 0']
    #allocation16 [shape = 'u8[32768]{0}', space=vmem, size = 0x8000, scoped, tag = 'output window, operand 1']
    %19 = vsyncpa [#allocation5], 0
    %s20 = scalar_lea.sflag [#allocation5], 1
    %21 = vsyncpa %s20, 0
    %22 = vsyncpa [#allocation8], 0
    %s23 = scalar_lea.sflag [#allocation8], 1
    %24 = vsyncpa %s23, 0
    %25 = vsyncpa [#allocation11], 0
    %26 = vsyncpa [#allocation14], 0
    %27 = vsyncpa [#allocation6], 0
    %s28 = scalar_lea.sflag [#allocation6], 1
    %29 = vsyncpa %s28, 0
    loop: start=0, step=1, limit=6
    $region2: #{tpu_custom_call.1} parent=1 // loop_pre_header
      _
    $region3: #{tpu_custom_call.1} parent=1 // loop_header
      %s31 = sphi 0, %s35
      %p32 = scmp.ge.s32.totalorder %s31, 6
      %s38 = sphi 0, %s50
      %s39 = sphi 0, %s46
      %s40 = sphi 0, %s38
      %s41 = sphi 0, %s39
      %s42 = sphi 0, %s40
      %s43 = sphi 0, %s41
      %s53 = sphi 0, %s55
      %s56 = sphi 0, %s53
      %s57 = sphi 0, %s56
      %s73 = sphi 0, %s57
      %s79 = sphi 0, %s81
      %s82 = sphi 0, %s79
      %s83 = sphi 0, %s82
      %s99 = sphi 0, %s83
      %s107 = sphi 0, %s109
      %s110 = sphi 0, %s107
      %s111 = sphi 0, %s110
      %s127 = sphi 0, %s111
      %s135 = sphi 0, %s137
      %s138 = sphi 0, %s135
      %s139 = sphi 0, %s138
      %s155 = sphi 0, %s139
      %s159 = sphi 0, %s159
      %s161 = sphi 0, %s159
      %s162 = sphi 0, %s161
      %s176 = sphi 0, %s162
      %s180 = sphi 0, %s180
      %s182 = sphi 0, %s180
      %s183 = sphi 0, %s182
      %s197 = sphi 0, %s183
      %s201 = sphi 0, %s201
      %s203 = sphi 0, %s201
      %s204 = sphi 0, %s203
      %s218 = sphi 0, %s204
      %s222 = sphi 0, %s222
      %s224 = sphi 0, %s222
      %s225 = sphi 0, %s224
      %s239 = sphi 0, %s225
      %s243 = sphi 0, %s243
      %s245 = sphi 0, %s243
      %s246 = sphi 0, %s245
      %s260 = sphi 0, %s246
      %s264 = sphi 0, %s264
      %s266 = sphi 0, %s264
      %s267 = sphi 0, %s266
      %s281 = sphi 0, %s267
      %s285 = sphi 0, %s285
      %s287 = sphi 0, %s285
      %s288 = sphi 0, %s287
      %s302 = sphi 0, %s288
      %s306 = sphi 0, %s306
      %s308 = sphi 0, %s306
      %s309 = sphi 0, %s308
      %s323 = sphi 0, %s309
      %s331 = sphi 0, %s333
      %s334 = sphi 0, %s331
      %s335 = sphi 0, %s334
      %s351 = sphi 0, %s335
      %s359 = sphi 0, %s361
      %s362 = sphi 0, %s359
      %s363 = sphi 0, %s362
      %s379 = sphi 0, %s363
    $region4: #{tpu_custom_call.1} parent=1 // loop_header_branch
      %34 = sbr.rel (%p32) target = $region8
    $region5: #{tpu_custom_call.1} parent=1 // loop_body
      %s36 = ssub.s32 %s31, 1
      %s37 = ssub.s32 %s31, 2
      %s44 = sadd.s32 1, %s39
      %p45 = scmp.ge.s32.totalorder %s44, 2
      %s46 = scalar_select %p45, 0, %s44
      %s47 = sadd.s32 1, %s38
      %s48 = scalar_select %p45, %s47, %s38
      %p49 = scmp.ge.s32.totalorder %s48, 2
      %s50 = scalar_select %p49, 0, %s48
      %s51 = ssub.s32 %s38, %s50
      %p52 = scmp.eq.s32.totalorder %s51, 0
      %s54 = sadd.s32 %s53, 1
      %s55 = scalar_select %p52, %s53, %s54
      %p58 = pneg %p52
      %p59 = scmp.eq.s32.totalorder %s31, 3
      %p60 = por %p58, %p59
      %p61 = scmp.ne.s32.totalorder %s53, %s56
      %p62 = scmp.eq.s32.totalorder %s31, 0
      %p63 = por %p61, %p62
      %p64 = scmp.ne.s32.totalorder %s53, %s56
      %p65 = scmp.eq.s32.totalorder %s36, 3
      %p66 = por %p64, %p65
      %p67 = scmp.ne.s32.totalorder %s56, %s57
      %p68 = scmp.eq.s32.totalorder %s36, 0
      %p69 = por %p67, %p68
      %p70 = scmp.ne.s32.totalorder %s56, %s57
      %p71 = scmp.eq.s32.totalorder %s37, 3
      %p72 = por %p70, %p71
      %p74 = scmp.ne.s32.totalorder %s57, %s73
      %p75 = scmp.eq.s32.totalorder %s37, 0
      %p76 = por %p74, %p75
      %s77 = ssub.s32 %s38, %s50
      %p78 = scmp.eq.s32.totalorder %s77, 0
      %s80 = sadd.s32 %s79, 1
      %s81 = scalar_select %p78, %s79, %s80
      %p84 = pneg %p78
      %p85 = scmp.eq.s32.totalorder %s31, 3
      %p86 = por %p84, %p85
      %p87 = scmp.ne.s32.totalorder %s79, %s82
      %p88 = scmp.eq.s32.totalorder %s31, 0
      %p89 = por %p87, %p88
      %p90 = scmp.ne.s32.totalorder %s79, %s82
      %p91 = scmp.eq.s32.totalorder %s36, 3
      %p92 = por %p90, %p91
      %p93 = scmp.ne.s32.totalorder %s82, %s83
      %p94 = scmp.eq.s32.totalorder %s36, 0
      %p95 = por %p93, %p94
      %p96 = scmp.ne.s32.totalorder %s82, %s83
      %p97 = scmp.eq.s32.totalorder %s37, 3
      %p98 = por %p96, %p97
      %p100 = scmp.ne.s32.totalorder %s83, %s99
      %p101 = scmp.eq.s32.totalorder %s37, 0
      %p102 = por %p100, %p101
      %s103 = ssub.s32 %s38, %s50
      %s104 = ssub.s32 %s39, %s46
      %s105 = sor.u32 %s103, %s104
      %p106 = scmp.eq.s32.totalorder %s105, 0
      %s108 = sadd.s32 %s107, 1
      %s109 = scalar_select %p106, %s107, %s108
      %p112 = pneg %p106
      %p113 = scmp.eq.s32.totalorder %s31, 3
      %p114 = por %p112, %p113
      %p115 = scmp.ne.s32.totalorder %s107, %s110
      %p116 = scmp.eq.s32.totalorder %s31, 0
      %p117 = por %p115, %p116
      %p118 = scmp.ne.s32.totalorder %s107, %s110
      %p119 = scmp.eq.s32.totalorder %s36, 3
      %p120 = por %p118, %p119
      %p121 = scmp.ne.s32.totalorder %s110, %s111
      %p122 = scmp.eq.s32.totalorder %s36, 0
      %p123 = por %p121, %p122
      %p124 = scmp.ne.s32.totalorder %s110, %s111
      %p125 = scmp.eq.s32.totalorder %s37, 3
      %p126 = por %p124, %p125
      %p128 = scmp.ne.s32.totalorder %s111, %s127
      %p129 = scmp.eq.s32.totalorder %s37, 0
      %p130 = por %p128, %p129
      %s131 = ssub.s32 %s38, %s50
      %s132 = ssub.s32 %s39, %s46
      %s133 = sor.u32 %s131, %s132
      %p134 = scmp.eq.s32.totalorder %s133, 0
      %s136 = sadd.s32 %s135, 1
      %s137 = scalar_select %p134, %s135, %s136
      %p140 = pneg %p134
      %p141 = scmp.eq.s32.totalorder %s31, 3
      %p142 = por %p140, %p141
      %p143 = scmp.ne.s32.totalorder %s135, %s138
      %p144 = scmp.eq.s32.totalorder %s31, 0
      %p145 = por %p143, %p144
      %p146 = scmp.ne.s32.totalorder %s135, %s138
      %p147 = scmp.eq.s32.totalorder %s36, 3
      %p148 = por %p146, %p147
      %p149 = scmp.ne.s32.totalorder %s138, %s139
      %p150 = scmp.eq.s32.totalorder %s36, 0
      %p151 = por %p149, %p150
      %p152 = scmp.ne.s32.totalorder %s138, %s139
      %p153 = scmp.eq.s32.totalorder %s37, 3
      %p154 = por %p152, %p153
      %p156 = scmp.ne.s32.totalorder %s139, %s155
      %p157 = scmp.eq.s32.totalorder %s37, 0
      %p158 = por %p156, %p157
      %s160 = sadd.s32 %s159, 1
      %p163 = scmp.eq.s32.totalorder %s31, 3
      %p164 = scmp.ne.s32.totalorder %s159, %s161
      %p165 = scmp.eq.s32.totalorder %s31, 0
      %p166 = por %p164, %p165
      %p167 = scmp.ne.s32.totalorder %s159, %s161
      %p168 = scmp.eq.s32.totalorder %s36, 3
      %p169 = por %p167, %p168
      %p170 = scmp.ne.s32.totalorder %s161, %s162
      %p171 = scmp.eq.s32.totalorder %s36, 0
      %p172 = por %p170, %p171
      %p173 = scmp.ne.s32.totalorder %s161, %s162
      %p174 = scmp.eq.s32.totalorder %s37, 3
      %p175 = por %p173, %p174
      %p177 = scmp.ne.s32.totalorder %s162, %s176
      %p178 = scmp.eq.s32.totalorder %s37, 0
      %p179 = por %p177, %p178
      %s181 = sadd.s32 %s180, 1
      %p184 = scmp.eq.s32.totalorder %s31, 3
      %p185 = scmp.ne.s32.totalorder %s180, %s182
      %p186 = scmp.eq.s32.totalorder %s31, 0
      %p187 = por %p185, %p186
      %p188 = scmp.ne.s32.totalorder %s180, %s182
      %p189 = scmp.eq.s32.totalorder %s36, 3
      %p190 = por %p188, %p189
      %p191 = scmp.ne.s32.totalorder %s182, %s183
      %p192 = scmp.eq.s32.totalorder %s36, 0
      %p193 = por %p191, %p192
      %p194 = scmp.ne.s32.totalorder %s182, %s183
      %p195 = scmp.eq.s32.totalorder %s37, 3
      %p196 = por %p194, %p195
      %p198 = scmp.ne.s32.totalorder %s183, %s197
      %p199 = scmp.eq.s32.totalorder %s37, 0
      %p200 = por %p198, %p199
      %s202 = sadd.s32 %s201, 1
      %p205 = scmp.eq.s32.totalorder %s31, 3
      %p206 = scmp.ne.s32.totalorder %s201, %s203
      %p207 = scmp.eq.s32.totalorder %s31, 0
      %p208 = por %p206, %p207
      %p209 = scmp.ne.s32.totalorder %s201, %s203
      %p210 = scmp.eq.s32.totalorder %s36, 3
      %p211 = por %p209, %p210
      %p212 = scmp.ne.s32.totalorder %s203, %s204
      %p213 = scmp.eq.s32.totalorder %s36, 0
      %p214 = por %p212, %p213
      %p215 = scmp.ne.s32.totalorder %s203, %s204
      %p216 = scmp.eq.s32.totalorder %s37, 3
      %p217 = por %p215, %p216
      %p219 = scmp.ne.s32.totalorder %s204, %s218
      %p220 = scmp.eq.s32.totalorder %s37, 0
      %p221 = por %p219, %p220
      %s223 = sadd.s32 %s222, 1
      %p226 = scmp.eq.s32.totalorder %s31, 3
      %p227 = scmp.ne.s32.totalorder %s222, %s224
      %p228 = scmp.eq.s32.totalorder %s31, 0
      %p229 = por %p227, %p228
      %p230 = scmp.ne.s32.totalorder %s222, %s224
      %p231 = scmp.eq.s32.totalorder %s36, 3
      %p232 = por %p230, %p231
      %p233 = scmp.ne.s32.totalorder %s224, %s225
      %p234 = scmp.eq.s32.totalorder %s36, 0
      %p235 = por %p233, %p234
      %p236 = scmp.ne.s32.totalorder %s224, %s225
      %p237 = scmp.eq.s32.totalorder %s37, 3
      %p238 = por %p236, %p237
      %p240 = scmp.ne.s32.totalorder %s225, %s239
      %p241 = scmp.eq.s32.totalorder %s37, 0
      %p242 = por %p240, %p241
      %s244 = sadd.s32 %s243, 1
      %p247 = scmp.eq.s32.totalorder %s31, 3
      %p248 = scmp.ne.s32.totalorder %s243, %s245
      %p249 = scmp.eq.s32.totalorder %s31, 0
      %p250 = por %p248, %p249
      %p251 = scmp.ne.s32.totalorder %s243, %s245
      %p252 = scmp.eq.s32.totalorder %s36, 3
      %p253 = por %p251, %p252
      %p254 = scmp.ne.s32.totalorder %s245, %s246
      %p255 = scmp.eq.s32.totalorder %s36, 0
      %p256 = por %p254, %p255
      %p257 = scmp.ne.s32.totalorder %s245, %s246
      %p258 = scmp.eq.s32.totalorder %s37, 3
      %p259 = por %p257, %p258
      %p261 = scmp.ne.s32.totalorder %s246, %s260
      %p262 = scmp.eq.s32.totalorder %s37, 0
      %p263 = por %p261, %p262
      %s265 = sadd.s32 %s264, 1
      %p268 = scmp.eq.s32.totalorder %s31, 3
      %p269 = scmp.ne.s32.totalorder %s264, %s266
      %p270 = scmp.eq.s32.totalorder %s31, 0
      %p271 = por %p269, %p270
      %p272 = scmp.ne.s32.totalorder %s264, %s266
      %p273 = scmp.eq.s32.totalorder %s36, 3
      %p274 = por %p272, %p273
      %p275 = scmp.ne.s32.totalorder %s266, %s267
      %p276 = scmp.eq.s32.totalorder %s36, 0
      %p277 = por %p275, %p276
      %p278 = scmp.ne.s32.totalorder %s266, %s267
      %p279 = scmp.eq.s32.totalorder %s37, 3
      %p280 = por %p278, %p279
      %p282 = scmp.ne.s32.totalorder %s267, %s281
      %p283 = scmp.eq.s32.totalorder %s37, 0
      %p284 = por %p282, %p283
      %s286 = sadd.s32 %s285, 1
      %p289 = scmp.eq.s32.totalorder %s31, 3
      %p290 = scmp.ne.s32.totalorder %s285, %s287
      %p291 = scmp.eq.s32.totalorder %s31, 0
      %p292 = por %p290, %p291
      %p293 = scmp.ne.s32.totalorder %s285, %s287
      %p294 = scmp.eq.s32.totalorder %s36, 3
      %p295 = por %p293, %p294
      %p296 = scmp.ne.s32.totalorder %s287, %s288
      %p297 = scmp.eq.s32.totalorder %s36, 0
      %p298 = por %p296, %p297
      %p299 = scmp.ne.s32.totalorder %s287, %s288
      %p300 = scmp.eq.s32.totalorder %s37, 3
      %p301 = por %p299, %p300
      %p303 = scmp.ne.s32.totalorder %s288, %s302
      %p304 = scmp.eq.s32.totalorder %s37, 0
      %p305 = por %p303, %p304
      %s307 = sadd.s32 %s306, 1
      %p310 = scmp.eq.s32.totalorder %s31, 3
      %p311 = scmp.ne.s32.totalorder %s306, %s308
      %p312 = scmp.eq.s32.totalorder %s31, 0
      %p313 = por %p311, %p312
      %p314 = scmp.ne.s32.totalorder %s306, %s308
      %p315 = scmp.eq.s32.totalorder %s36, 3
      %p316 = por %p314, %p315
      %p317 = scmp.ne.s32.totalorder %s308, %s309
      %p318 = scmp.eq.s32.totalorder %s36, 0
      %p319 = por %p317, %p318
      %p320 = scmp.ne.s32.totalorder %s308, %s309
      %p321 = scmp.eq.s32.totalorder %s37, 3
      %p322 = por %p320, %p321
      %p324 = scmp.ne.s32.totalorder %s309, %s323
      %p325 = scmp.eq.s32.totalorder %s37, 0
      %p326 = por %p324, %p325
      %s327 = ssub.s32 %s38, %s50
      %s328 = ssub.s32 %s39, %s46
      %s329 = sor.u32 %s327, %s328
      %p330 = scmp.eq.s32.totalorder %s329, 0
      %s332 = sadd.s32 %s331, 1
      %s333 = scalar_select %p330, %s331, %s332
      %p336 = pneg %p330
      %p337 = scmp.eq.s32.totalorder %s31, 3
      %p338 = por %p336, %p337
      %p339 = scmp.ne.s32.totalorder %s331, %s334
      %p340 = scmp.eq.s32.totalorder %s31, 0
      %p341 = por %p339, %p340
      %p342 = scmp.ne.s32.totalorder %s331, %s334
      %p343 = scmp.eq.s32.totalorder %s36, 3
      %p344 = por %p342, %p343
      %p345 = scmp.ne.s32.totalorder %s334, %s335
      %p346 = scmp.eq.s32.totalorder %s36, 0
      %p347 = por %p345, %p346
      %p348 = scmp.ne.s32.totalorder %s334, %s335
      %p349 = scmp.eq.s32.totalorder %s37, 3
      %p350 = por %p348, %p349
      %p352 = scmp.ne.s32.totalorder %s335, %s351
      %p353 = scmp.eq.s32.totalorder %s37, 0
      %p354 = por %p352, %p353
      %s355 = ssub.s32 %s38, %s50
      %s356 = ssub.s32 %s39, %s46
      %s357 = sor.u32 %s355, %s356
      %p358 = scmp.eq.s32.totalorder %s357, 0
      %s360 = sadd.s32 %s359, 1
      %s361 = scalar_select %p358, %s359, %s360
      %p364 = pneg %p358
      %p365 = scmp.eq.s32.totalorder %s31, 3
      %p366 = por %p364, %p365
      %p367 = scmp.ne.s32.totalorder %s359, %s362
      %p368 = scmp.eq.s32.totalorder %s31, 0
      %p369 = por %p367, %p368
      %p370 = scmp.ne.s32.totalorder %s359, %s362
      %p371 = scmp.eq.s32.totalorder %s36, 3
      %p372 = por %p370, %p371
      %p373 = scmp.ne.s32.totalorder %s362, %s363
      %p374 = scmp.eq.s32.totalorder %s36, 0
      %p375 = por %p373, %p374
      %p376 = scmp.ne.s32.totalorder %s362, %s363
      %p377 = scmp.eq.s32.totalorder %s37, 3
      %p378 = por %p376, %p377
      %p380 = scmp.ne.s32.totalorder %s363, %s379
      %p381 = scmp.eq.s32.totalorder %s37, 0
      %p382 = por %p380, %p381
      %p383 = scmp.le.s32.totalorder 1, %s31
      %p384 = scmp.lt.s32.totalorder %s31, 5
      %p385 = pnand %p383, %p384
      %p386 = pneg %p385
      // Predicated region
      $region9: #{tpu_custom_call.1} parent=5 // pred_check
        _
      $region10: #{tpu_custom_call.1} parent=5 // pred_check_branch
        %388 = sbr.rel (%p385) target = $region12
      $region11: #{tpu_custom_call.1} parent=5 // pred_region
        %s389 = ssub.s32 %s31, 1
        // Predicated region
        $region13: #{tpu_custom_call.1} parent=11 // pred_check
          %p390 = pneg %p172
        $region14: #{tpu_custom_call.1} parent=11 // pred_check_branch
          %392 = sbr.rel (%p390) target = $region16
        $region15: #{tpu_custom_call.1} parent=11 // pred_region
          %s394 = ssub.s32 256, 256
          %395 = vsyncadd [#allocation8], %s394
          %s396 = sshll.u32 [#allocation9], 4
          %s397 = int_to_ptr.vmem [resolvable:$true] %s396
          %402 = dma.hbm_to_vmem [thread:$0]  %s4, 256, %s397, [#allocation8], 64, 64, 4
        $region16: #{tpu_custom_call.1} parent=11 // pred_fallthru
          _
        // Predicated region
        $region17: #{tpu_custom_call.1} parent=11 // pred_check
          %p403 = pneg %p193
        $region18: #{tpu_custom_call.1} parent=11 // pred_check_branch
          %405 = sbr.rel (%p403) target = $region20
        $region19: #{tpu_custom_call.1} parent=11 // pred_region
          _
        $region20: #{tpu_custom_call.1} parent=11 // pred_fallthru
          _
        // Predicated region
        $region21: #{tpu_custom_call.1} parent=11 // pred_check
          %p406 = pneg %p214
        $region22: #{tpu_custom_call.1} parent=11 // pred_check_branch
          %408 = sbr.rel (%p406) target = $region24
        $region23: #{tpu_custom_call.1} parent=11 // pred_region
          _
        $region24: #{tpu_custom_call.1} parent=11 // pred_fallthru
          _
        // Predicated region
        $region25: #{tpu_custom_call.1} parent=11 // pred_check
          %p409 = pneg %p235
        $region26: #{tpu_custom_call.1} parent=11 // pred_check_branch
          %411 = sbr.rel (%p409) target = $region28
        $region27: #{tpu_custom_call.1} parent=11 // pred_region
          %s413 = ssub.s32 16, 16
          %414 = vsyncadd [#allocation11], %s413
          %s416 = sshll.u32 [#allocation10], 4
          %s417 = int_to_ptr.vmem [resolvable:$true] %s416
          %419 = dma.hbm_to_vmem [thread:$0]  %s7, 16, %s417, [#allocation11]
        $region28: #{tpu_custom_call.1} parent=11 // pred_fallthru
          _
        // Predicated region
        $region29: #{tpu_custom_call.1} parent=11 // pred_check
          %p420 = pneg %p256
        $region30: #{tpu_custom_call.1} parent=11 // pred_check_branch
          %422 = sbr.rel (%p420) target = $region32
        $region31: #{tpu_custom_call.1} parent=11 // pred_region
          %s424 = ssub.s32 256, 256
          %425 = vsyncadd [#allocation11], %s424
          %s426 = sshll.u32 [#allocation12], 4
          %s427 = int_to_ptr.vmem [resolvable:$true] %s426
          %432 = dma.hbm_to_vmem [thread:$0]  %s8, 256, %s427, [#allocation11], 64, 64, 4
        $region32: #{tpu_custom_call.1} parent=11 // pred_fallthru
          _
        // Predicated region
        $region33: #{tpu_custom_call.1} parent=11 // pred_check
          %p433 = pneg %p277
        $region34: #{tpu_custom_call.1} parent=11 // pred_check_branch
          %435 = sbr.rel (%p433) target = $region36
        $region35: #{tpu_custom_call.1} parent=11 // pred_region
          %s437 = ssub.s32 16, 16
          %438 = vsyncadd [#allocation14], %s437
          %s440 = sshll.u32 [#allocation13], 4
          %s441 = int_to_ptr.vmem [resolvable:$true] %s440
          %443 = dma.hbm_to_vmem [thread:$0]  %s9, 16, %s441, [#allocation14]
        $region36: #{tpu_custom_call.1} parent=11 // pred_fallthru
          _
        // Predicated region
        $region37: #{tpu_custom_call.1} parent=11 // pred_check
          %p444 = pneg %p298
        $region38: #{tpu_custom_call.1} parent=11 // pred_check_branch
          %446 = sbr.rel (%p444) target = $region40
        $region39: #{tpu_custom_call.1} parent=11 // pred_region
          _
        $region40: #{tpu_custom_call.1} parent=11 // pred_fallthru
          _
        // Predicated region
        $region41: #{tpu_custom_call.1} parent=11 // pred_check
          %p447 = pneg %p319
        $region42: #{tpu_custom_call.1} parent=11 // pred_check_branch
          %449 = sbr.rel (%p447) target = $region44
        $region43: #{tpu_custom_call.1} parent=11 // pred_region
          _
        $region44: #{tpu_custom_call.1} parent=11 // pred_fallthru
          _
      $region12: #{tpu_custom_call.1} parent=5 // pred_fallthru
        _
      %p450 = scmp.lt.s32.totalorder %s31, 4
      // Predicated region
      $region45: #{tpu_custom_call.1} parent=5 // pred_check
        %p451 = pneg %p450
      $region46: #{tpu_custom_call.1} parent=5 // pred_check_branch
        %453 = sbr.rel (%p451) target = $region48
      $region47: #{tpu_custom_call.1} parent=5 // pred_region
        // Predicated region
        $region49: #{tpu_custom_call.1} parent=47 // pred_check
          %p454 = pneg %p63
        $region50: #{tpu_custom_call.1} parent=47 // pred_check_branch
          %456 = sbr.rel (%p454) target = $region52
        $region51: #{tpu_custom_call.1} parent=47 // pred_region
          %s457 = sand.u32 %s53, 1
          %s458 = scalar_lea.sflag [#allocation5], %s457
          %s459 = sand.u32 %s53, 1
          %s460 = smul.addr %s459, 4
          %s461 = scalar_lea.vmem [#allocation4], %s460
          %s463 = ssub.s32 64, 64
          %464 = vsyncadd %s458, %s463
          %s465 = smul.addr %s38, 64
          %s466 = scalar_lea.hbm %s0, %s465
          %s468 = sshll.u32 %s461, 4
          %s469 = int_to_ptr.vmem [resolvable:$true] %s468
          %471 = dma.hbm_to_vmem [thread:$0]  %s466, 64, %s469, %s458
        $region52: #{tpu_custom_call.1} parent=47 // pred_fallthru
          _
        // Predicated region
        $region53: #{tpu_custom_call.1} parent=47 // pred_check
          %p472 = pneg %p89
        $region54: #{tpu_custom_call.1} parent=47 // pred_check_branch
          %474 = sbr.rel (%p472) target = $region56
        $region55: #{tpu_custom_call.1} parent=47 // pred_region
          %s475 = sand.u32 %s31, 1
          %s476 = scalar_lea.sflag [#allocation8], %s475
          %s477 = sand.u32 %s79, 1
          %s478 = smul.addr %s477, 4
          %s479 = scalar_lea.vmem [#allocation7], %s478
          %s481 = ssub.s32 64, 64
          %482 = vsyncadd %s476, %s481
          %s483 = smul.addr %s38, 64
          %s484 = scalar_lea.hbm %s1, %s483
          %s486 = sshll.u32 %s479, 4
          %s487 = int_to_ptr.vmem [resolvable:$true] %s486
          %489 = dma.hbm_to_vmem [thread:$0]  %s484, 64, %s487, %s476
        $region56: #{tpu_custom_call.1} parent=47 // pred_fallthru
          _
        // Predicated region
        $region57: #{tpu_custom_call.1} parent=47 // pred_check
          %p490 = pneg %p117
        $region58: #{tpu_custom_call.1} parent=47 // pred_check_branch
          %492 = sbr.rel (%p490) target = $region60
        $region59: #{tpu_custom_call.1} parent=47 // pred_region
          %p493 = scmp.lt.s32.totalorder %s38, 1
          %s494 = scalar_select %p493, %s38, 1
          %p495 = scmp.lt.s32.totalorder %s39, 1
          %s496 = scalar_select %p495, %s39, 1
          %s497 = smul.addr %s494, 2
          %s498 = sadd.s32 %s496, %s497
          %s499 = smul.addr %s498, 4
          %s500 = scalar_lea.vmem %s2, %s499
        $region60: #{tpu_custom_call.1} parent=47 // pred_fallthru
          _
        // Predicated region
        $region61: #{tpu_custom_call.1} parent=47 // pred_check
          %p501 = pneg %p145
        $region62: #{tpu_custom_call.1} parent=47 // pred_check_branch
          %503 = sbr.rel (%p501) target = $region64
        $region63: #{tpu_custom_call.1} parent=47 // pred_region
          %p504 = scmp.lt.s32.totalorder %s38, 1
          %s505 = scalar_select %p504, %s38, 1
          %p506 = scmp.lt.s32.totalorder %s39, 1
          %s507 = scalar_select %p506, %s39, 1
          %s508 = smul.addr %s505, 2
          %s509 = sadd.s32 %s507, %s508
          %s510 = smul.addr %s509, 2
          %s511 = scalar_lea.vmem %s3, %s510
        $region64: #{tpu_custom_call.1} parent=47 // pred_fallthru
          _
      $region48: #{tpu_custom_call.1} parent=5 // pred_fallthru
        _
      %p512 = scmp.le.s32.totalorder 1, %s31
      %p513 = scmp.lt.s32.totalorder %s31, 5
      %p514 = pnand %p512, %p513
      %p515 = pneg %p514
      // Predicated region
      $region65: #{tpu_custom_call.1} parent=5 // pred_check
        _
      $region66: #{tpu_custom_call.1} parent=5 // pred_check_branch
        %517 = sbr.rel (%p514) target = $region68
      $region67: #{tpu_custom_call.1} parent=5 // pred_region
        %s518 = ssub.s32 %s31, 1
        %s519 = sand.u32 %s56, 1
        %s520 = scalar_lea.sflag [#allocation5], %s519
        %s521 = sand.u32 %s56, 1
        %s522 = smul.addr %s521, 4
        %s523 = scalar_lea.vmem [#allocation4], %s522
        // Predicated region
        $region69: #{tpu_custom_call.1} parent=67 // pred_check
          %p524 = pneg %p69
        $region70: #{tpu_custom_call.1} parent=67 // pred_check_branch
          %526 = sbr.rel (%p524) target = $region72
        $region71: #{tpu_custom_call.1} parent=67 // pred_region
          %527 = dma.done %s520, 64
        $region72: #{tpu_custom_call.1} parent=67 // pred_fallthru
          _
        %s528 = sand.u32 %s36, 1
        %s529 = scalar_lea.sflag [#allocation8], %s528
        %s530 = sand.u32 %s82, 1
        %s531 = smul.addr %s530, 4
        %s532 = scalar_lea.vmem [#allocation7], %s531
        // Predicated region
        $region73: #{tpu_custom_call.1} parent=67 // pred_check
          %p533 = pneg %p95
        $region74: #{tpu_custom_call.1} parent=67 // pred_check_branch
          %535 = sbr.rel (%p533) target = $region76
        $region75: #{tpu_custom_call.1} parent=67 // pred_region
          %536 = dma.done %s529, 64
        $region76: #{tpu_custom_call.1} parent=67 // pred_fallthru
          _
        // Predicated region
        $region77: #{tpu_custom_call.1} parent=67 // pred_check
          %p537 = pneg %p172
        $region78: #{tpu_custom_call.1} parent=67 // pred_check_branch
          %539 = sbr.rel (%p537) target = $region80
        $region79: #{tpu_custom_call.1} parent=67 // pred_region
          %540 = dma.done [#allocation8], 256
        $region80: #{tpu_custom_call.1} parent=67 // pred_fallthru
          _
        // Predicated region
        $region81: #{tpu_custom_call.1} parent=67 // pred_check
          %p541 = pneg %p235
        $region82: #{tpu_custom_call.1} parent=67 // pred_check_branch
          %543 = sbr.rel (%p541) target = $region84
        $region83: #{tpu_custom_call.1} parent=67 // pred_region
          %544 = dma.done [#allocation11], 16
        $region84: #{tpu_custom_call.1} parent=67 // pred_fallthru
          _
        // Predicated region
        $region85: #{tpu_custom_call.1} parent=67 // pred_check
          %p545 = pneg %p256
        $region86: #{tpu_custom_call.1} parent=67 // pred_check_branch
          %547 = sbr.rel (%p545) target = $region88
        $region87: #{tpu_custom_call.1} parent=67 // pred_region
          %548 = dma.done [#allocation11], 256
        $region88: #{tpu_custom_call.1} parent=67 // pred_fallthru
          _
        // Predicated region
        $region89: #{tpu_custom_call.1} parent=67 // pred_check
          %p549 = pneg %p277
        $region90: #{tpu_custom_call.1} parent=67 // pred_check_branch
          %551 = sbr.rel (%p549) target = $region92
        $region91: #{tpu_custom_call.1} parent=67 // pred_region
          %552 = dma.done [#allocation14], 16
        $region92: #{tpu_custom_call.1} parent=67 // pred_fallthru
          _
        %s553 = sand.u32 %s56, 1
        %s554 = scalar_lea.sflag [#allocation5], %s553
        %s555 = sand.u32 %s56, 1
        %s556 = smul.addr %s555, 4
        %s557 = scalar_lea.vmem [#allocation4], %s556
        %p558 = pneg %p69
        %p559 = pneg %p66
        %s560 = sand.u32 %s36, 1
        %s561 = scalar_lea.sflag [#allocation8], %s560
        %s562 = sand.u32 %s82, 1
        %s563 = smul.addr %s562, 4
        %s564 = scalar_lea.vmem [#allocation7], %s563
        %p565 = pneg %p95
        %p566 = pneg %p92
        %p567 = scmp.lt.s32.totalorder %s40, 1
        %s568 = scalar_select %p567, %s40, 1
        %p569 = scmp.lt.s32.totalorder %s41, 1
        %s570 = scalar_select %p569, %s41, 1
        %s571 = smul.addr %s568, 2
        %s572 = sadd.s32 %s570, %s571
        %s573 = smul.addr %s572, 4
        %s574 = scalar_lea.vmem %s2, %s573
        %p575 = pneg %p123
        %p576 = pneg %p120
        %p577 = scmp.lt.s32.totalorder %s40, 1
        %s578 = scalar_select %p577, %s40, 1
        %p579 = scmp.lt.s32.totalorder %s41, 1
        %s580 = scalar_select %p579, %s41, 1
        %s581 = smul.addr %s578, 2
        %s582 = sadd.s32 %s580, %s581
        %s583 = smul.addr %s582, 2
        %s584 = scalar_lea.vmem %s3, %s583
        %p585 = pneg %p151
        %p586 = pneg %p148
        %p587 = pneg %p172
        %p588 = pneg %p169
        %p589 = pneg %p193
        %p590 = pneg %p190
        %p591 = pneg %p214
        %p592 = pneg %p211
        %p593 = pneg %p235
        %p594 = pneg %p232
        %p595 = pneg %p256
        %p596 = pneg %p253
        %p597 = pneg %p277
        %p598 = pneg %p274
        %p599 = pneg %p298
        %p600 = pneg %p295
        %p601 = pneg %p319
        %p602 = pneg %p316
        %p603 = pneg %p347
        %p604 = pneg %p344
        %s605 = sand.u32 %s334, 1
        %s606 = scalar_lea.sflag [#allocation6], %s605
        %s607 = sand.u32 %s334, 1
        %s608 = smul.addr %s607, 8
        %s609 = scalar_lea.vmem [#allocation15], %s608
        %p610 = pneg %p375
        %p611 = pneg %p372
        %s612 = sand.u32 %s362, 1
        %s613 = sand.u32 %s362, 1
        %s614 = smul.addr %s613, 32
        %s615 = scalar_lea.vmem [#allocation16], %s614
        %p616 = scmp.lt.s32.totalorder %s40, 1
        %s617 = scalar_select %p616, %s40, 1
        %p618 = scmp.lt.s32.totalorder %s41, 1
        %s619 = scalar_select %p618, %s41, 1
        %s620 = smul.addr %s617, 2
        %s621 = sadd.s32 %s619, %s620
        %s622 = smul.addr %s621, 4
        %s623 = scalar_lea.vmem %s2, %s622
        %p624 = scmp.lt.s32.totalorder %s40, 1
        %s625 = scalar_select %p624, %s40, 1
        %p626 = scmp.lt.s32.totalorder %s41, 1
        %s627 = scalar_select %p626, %s41, 1
        %s628 = smul.addr %s625, 2
        %s629 = sadd.s32 %s627, %s628
        %s630 = smul.addr %s629, 2
        %s631 = scalar_lea.vmem %s3, %s630
        %p633 = scmp.eq.s32.totalorder %s41, 0
        // Predicated region
        $region93: #{tpu_custom_call.1} parent=67 // pred_check
          %p634 = pneg %p633
        $region94: #{tpu_custom_call.1} parent=67 // pred_check_branch
          %636 = sbr.rel (%p634) target = $region96
        $region95: #{tpu_custom_call.1} parent=67 // pred_region
          %v637 = vld [vmem:[%s523] sm:$0xf]
          %v638 = vld [vmem:[%s532] sm:$0xf]
          %v639 = vld [vmem:[#allocation9] sm:$0xf]
          %v640 = vld [vmem:[#allocation9 + $0x4] sm:$0xf]
          %v641 = vld [vmem:[#allocation9 + $0x8] sm:$0xf]
          %v642 = vld [vmem:[#allocation9 + $0xc] sm:$0xf]
          %v643 = vld [vmem:[%s5] sm:$0x1]
          %v645 = vlaneseq
          %v646 = vshrl.u32 %v645, 7
          %v647 = vsub.s32 0, %v646
          %v648 = vrot.slane %v643, %v647
          %v654 = vunpack.c.l.b16 %v639
          %v655 = vunpack.c.l.b16 %v640
          %v656 = vunpack.c.l.b16 %v641
          %v657 = vunpack.c.l.b16 %v642
          %v658 = vpack.c.b16 %v655, %v654
          %v659 = vpack.c.b16 %v657, %v656
          %vm662 = vcmask 261120
          %v664 = vsel %vm662, %v637, 0
          %666 = vmatprep.subr.bf16.mxu0 0
          %667 = vmatpush1.bf16.msra.mxu0 %v658
          %668 = vmatprep.subr.bf16.mxu0 0
          %669 = vmatpush1.bf16.msra.mxu0 %v659
          %670 = vmatprep.subr.bf16.mxu0 0
          %671 = vmatpush1.bf16.msra.mxu0 0
          %672 = vmatprep.subr.bf16.mxu0 0
          %673 = vmatpush1.bf16.msra.mxu0 0
          %674 = vmatprep.subr.bf16.mxu0 0
          %675 = vmatpush1.bf16.msra.mxu0 0
          %676 = vmatprep.subr.bf16.mxu0 0
          %677 = vmatpush1.bf16.msra.mxu0 0
          %678 = vmatprep.subr.bf16.mxu0 0
          %679 = vmatpush1.bf16.msra.mxu0 0
          %680 = vmatprep.subr.bf16.mxu0 0
          %681 = vmatpush1.bf16.msra.mxu0 0
          %682 = vmatprep.subr.bf16.mxu0 0
          %683 = vmatpush1.bf16.msra.mxu0 0
          %684 = vmatprep.subr.bf16.mxu0 0
          %685 = vmatpush1.bf16.msra.mxu0 0
          %686 = vmatprep.subr.bf16.mxu0 0
          %687 = vmatpush1.bf16.msra.mxu0 0
          %688 = vmatprep.subr.bf16.mxu0 0
          %689 = vmatpush1.bf16.msra.mxu0 0
          %690 = vmatprep.subr.bf16.mxu0 0
          %691 = vmatpush1.bf16.msra.mxu0 0
          %692 = vmatprep.subr.bf16.mxu0 0
          %693 = vmatpush1.bf16.msra.mxu0 0
          %694 = vmatprep.subr.bf16.mxu0 0
          %695 = vmatpush1.bf16.msra.mxu0 0
          %696 = vmatprep.subr.bf16.mxu0 0
          %697 = vmatpush1.bf16.msra.mxu0 0
          %698 = vmatprep.mubr.bf16.mxu0 0
          %699 = vmatmul.mubr.bf16.gmra.mrb[0].mxu0 %v664
          %v700 = vpop.f32.mrb[0].mxu0
          %v701 = vadd.f32 %v648, %v700
          %v702 = vpop.f32.mrb[0].mxu0
          %v703 = vpop.f32.mrb[0].mxu0
          %v704 = vpop.f32.mrb[0].mxu0
          %705 = vdwg.mxu0
          %v706 = vld [vmem:[#allocation12] sm:$0xf]
          %v707 = vld [vmem:[#allocation12 + $0x4] sm:$0xf]
          %v708 = vld [vmem:[#allocation12 + $0x8] sm:$0xf]
          %v709 = vld [vmem:[#allocation12 + $0xc] sm:$0xf]
          %v710 = vld [vmem:[#allocation13] sm:$0x1]
          %v712 = vlaneseq
          %v713 = vshrl.u32 %v712, 7
          %v714 = vsub.s32 0, %v713
          %v715 = vrot.slane %v710, %v714
          %v721 = vunpack.c.l.b16 %v706
          %v722 = vunpack.c.l.b16 %v707
          %v723 = vunpack.c.l.b16 %v708
          %v724 = vunpack.c.l.b16 %v709
          %v725 = vpack.c.b16 %v722, %v721
          %v726 = vpack.c.b16 %v724, %v723
          %v730 = vsel %vm662, %v638, 0
          %732 = vmatprep.subr.bf16.mxu0 0
          %733 = vmatpush1.bf16.msra.mxu0 %v725
          %734 = vmatprep.subr.bf16.mxu0 0
          %735 = vmatpush1.bf16.msra.mxu0 %v726
          %736 = vmatprep.subr.bf16.mxu0 0
          %737 = vmatpush1.bf16.msra.mxu0 0
          %738 = vmatprep.subr.bf16.mxu0 0
          %739 = vmatpush1.bf16.msra.mxu0 0
          %740 = vmatprep.subr.bf16.mxu0 0
          %741 = vmatpush1.bf16.msra.mxu0 0
          %742 = vmatprep.subr.bf16.mxu0 0
          %743 = vmatpush1.bf16.msra.mxu0 0
          %744 = vmatprep.subr.bf16.mxu0 0
          %745 = vmatpush1.bf16.msra.mxu0 0
          %746 = vmatprep.subr.bf16.mxu0 0
          %747 = vmatpush1.bf16.msra.mxu0 0
          %748 = vmatprep.subr.bf16.mxu0 0
          %749 = vmatpush1.bf16.msra.mxu0 0
          %750 = vmatprep.subr.bf16.mxu0 0
          %751 = vmatpush1.bf16.msra.mxu0 0
          %752 = vmatprep.subr.bf16.mxu0 0
          %753 = vmatpush1.bf16.msra.mxu0 0
          %754 = vmatprep.subr.bf16.mxu0 0
          %755 = vmatpush1.bf16.msra.mxu0 0
          %756 = vmatprep.subr.bf16.mxu0 0
          %757 = vmatpush1.bf16.msra.mxu0 0
          %758 = vmatprep.subr.bf16.mxu0 0
          %759 = vmatpush1.bf16.msra.mxu0 0
          %760 = vmatprep.subr.bf16.mxu0 0
          %761 = vmatpush1.bf16.msra.mxu0 0
          %762 = vmatprep.subr.bf16.mxu0 0
          %763 = vmatpush1.bf16.msra.mxu0 0
          %764 = vmatprep.mubr.bf16.mxu0 0
          %765 = vmatmul.mubr.bf16.gmra.mrb[0].mxu0 %v730
          %v766 = vpop.f32.mrb[0].mxu0
          %v767 = vadd.f32 %v715, %v766
          %v768 = vpop.f32.mrb[0].mxu0
          %v769 = vpop.f32.mrb[0].mxu0
          %v770 = vpop.f32.mrb[0].mxu0
          %771 = vdwg.mxu0
          %772 = vxpose.xlu0.b32.start [1/16] %v701, 128
          %773 = vxpose.xlu0.b32.cont [2/16] 0.0, 128
          %774 = vxpose.xlu0.b32.cont [3/16] 0.0, 128
          %775 = vxpose.xlu0.b32.cont [4/16] 0.0, 128
          %776 = vxpose.xlu0.b32.cont [5/16] 0.0, 128
          %777 = vxpose.xlu0.b32.cont [6/16] 0.0, 128
          %778 = vxpose.xlu0.b32.cont [7/16] 0.0, 128
          %779 = vxpose.xlu0.b32.cont [8/16] 0.0, 128
          %780 = vxpose.xlu0.b32.cont [9/16] 0.0, 128
          %781 = vxpose.xlu0.b32.cont [10/16] 0.0, 128
          %782 = vxpose.xlu0.b32.cont [11/16] 0.0, 128
          %783 = vxpose.xlu0.b32.cont [12/16] 0.0, 128
          %784 = vxpose.xlu0.b32.cont [13/16] 0.0, 128
          %785 = vxpose.xlu0.b32.cont [14/16] 0.0, 128
          %786 = vxpose.xlu0.b32.cont [15/16] 0.0, 128
          %787 = vxpose.xlu0.b32.end [16/16] 0.0, 128
          %v788 = vpop.trf.xlu0
          %v789 = vpop.trf.xlu0
          %v790 = vpop.trf.xlu0
          %v791 = vpop.trf.xlu0
          %v792 = vpop.trf.xlu0
          %v793 = vpop.trf.xlu0
          %v794 = vpop.trf.xlu0
          %v795 = vpop.trf.xlu0
          %v796 = vpop.trf.xlu0
          %v797 = vpop.trf.xlu0
          %v798 = vpop.trf.xlu0
          %v799 = vpop.trf.xlu0
          %v800 = vpop.trf.xlu0
          %v801 = vpop.trf.xlu0
          %v802 = vpop.trf.xlu0
          %v803 = vpop.trf.xlu0
          %v804 = vpack.c.bf16 %v788, %v788
          %v805 = vpack.c.bf16 %v789, %v789
          %v806 = vpack.c.bf16 %v790, %v790
          %v807 = vpack.c.bf16 %v791, %v791
          %vm808 = vcmask 60416
          %809 = vst.msk [vmem:[#allocation2] sm:$0xf] %vm808, %v804
          %810 = vst.msk [vmem:[#allocation2 + $0x4] sm:$0xf] %vm808, %v805
          %811 = vst.msk [vmem:[#allocation2 + $0x8] sm:$0xf] %vm808, %v806
          %812 = vst.msk [vmem:[#allocation2 + $0xc] sm:$0xf] %vm808, %v807
          %v813 = vpack.c.bf16 %v767, %v767
          %814 = vst.msk [vmem:[#allocation3] sm:$0xf] %vm808, %v813
          %v816 = vunpack.c.l.b16 %v813
          %v817 = vpack.c.b16 %v816, %v816
          %818 = vrot.lane.b32.xlu0 %v817, 120
          %v819 = vpop.permute.xlu0 %818
          %s821 = scalar_lea.vmem [#allocation3], 4
          %822 = vst.msk [vmem:[%s821] sm:$0xf] %vm808, %v819
          %823 = vrot.lane.b32.xlu0 %v817, 112
          %v824 = vpop.permute.xlu0 %823
          %s826 = scalar_lea.vmem [#allocation3], 8
          %827 = vst.msk [vmem:[%s826] sm:$0xf] %vm808, %v824
          %828 = vrot.lane.b32.xlu0 %v817, 104
          %v829 = vpop.permute.xlu0 %828
          %s831 = scalar_lea.vmem [#allocation3], 12
          %832 = vst.msk [vmem:[%s831] sm:$0xf] %vm808, %v829
        $region96: #{tpu_custom_call.1} parent=67 // pred_fallthru
          _
        %v833 = vld [vmem:[%s623] sm:$0xf]
        %v834 = vld [vmem:[%s6] sm:$0xf]
        %v835 = vld [vmem:[%s6 + $0x4] sm:$0xf]
        %v836 = vld [vmem:[%s6 + $0x8] sm:$0xf]
        %v837 = vld [vmem:[%s6 + $0xc] sm:$0xf]
        %v838 = vld [vmem:[#allocation10] sm:$0x1]
        %v840 = vlaneseq
        %v841 = vshrl.u32 %v840, 7
        %v842 = vsub.s32 0, %v841
        %v843 = vrot.slane %v838, %v842
        %v849 = vunpack.c.l.b16 %v834
        %v850 = vunpack.c.l.b16 %v835
        %v851 = vunpack.c.l.b16 %v836
        %v852 = vunpack.c.l.b16 %v837
        %v853 = vpack.c.b16 %v850, %v849
        %v854 = vpack.c.b16 %v852, %v851
        %vm857 = vcmask 261120
        %v859 = vsel %vm857, %v833, 0
        %861 = vmatprep.subr.bf16.mxu0 0
        %862 = vmatpush1.bf16.msra.mxu0 %v853
        %863 = vmatprep.subr.bf16.mxu0 0
        %864 = vmatpush1.bf16.msra.mxu0 %v854
        %865 = vmatprep.subr.bf16.mxu0 0
        %866 = vmatpush1.bf16.msra.mxu0 0
        %867 = vmatprep.subr.bf16.mxu0 0
        %868 = vmatpush1.bf16.msra.mxu0 0
        %869 = vmatprep.subr.bf16.mxu0 0
        %870 = vmatpush1.bf16.msra.mxu0 0
        %871 = vmatprep.subr.bf16.mxu0 0
        %872 = vmatpush1.bf16.msra.mxu0 0
        %873 = vmatprep.subr.bf16.mxu0 0
        %874 = vmatpush1.bf16.msra.mxu0 0
        %875 = vmatprep.subr.bf16.mxu0 0
        %876 = vmatpush1.bf16.msra.mxu0 0
        %877 = vmatprep.subr.bf16.mxu0 0
        %878 = vmatpush1.bf16.msra.mxu0 0
        %879 = vmatprep.subr.bf16.mxu0 0
        %880 = vmatpush1.bf16.msra.mxu0 0
        %881 = vmatprep.subr.bf16.mxu0 0
        %882 = vmatpush1.bf16.msra.mxu0 0
        %883 = vmatprep.subr.bf16.mxu0 0
        %884 = vmatpush1.bf16.msra.mxu0 0
        %885 = vmatprep.subr.bf16.mxu0 0
        %886 = vmatpush1.bf16.msra.mxu0 0
        %887 = vmatprep.subr.bf16.mxu0 0
        %888 = vmatpush1.bf16.msra.mxu0 0
        %889 = vmatprep.subr.bf16.mxu0 0
        %890 = vmatpush1.bf16.msra.mxu0 0
        %891 = vmatprep.subr.bf16.mxu0 0
        %892 = vmatpush1.bf16.msra.mxu0 0
        %893 = vmatprep.mubr.bf16.mxu0 0
        %894 = vmatmul.mubr.bf16.gmra.mrb[0].mxu0 %v859
        %v895 = vpop.f32.mrb[0].mxu0
        %v896 = vadd.f32 %v843, %v895
        %v897 = vpop.f32.mrb[0].mxu0
        %v898 = vpop.f32.mrb[0].mxu0
        %v899 = vpop.f32.mrb[0].mxu0
        %900 = vdwg.mxu0
        %v901 = vpack.c.bf16 %v896, %v896
        %903 = vrot.lane.b32.xlu0 %v901, 120
        %v904 = vpop.permute.xlu0 %903
        %905 = vrot.lane.b32.xlu0 %v901, 112
        %v906 = vpop.permute.xlu0 %905
        %907 = vrot.lane.b32.xlu0 %v901, 104
        %v908 = vpop.permute.xlu0 %907
        %v909 = vld [vmem:[#allocation2] sm:$0xf]
        %v910 = vld [vmem:[#allocation2 + $0x4] sm:$0xf]
        %v911 = vld [vmem:[#allocation2 + $0x8] sm:$0xf]
        %v912 = vld [vmem:[#allocation2 + $0xc] sm:$0xf]
        %v913 = vld [vmem:[%s631] sm:$0x3]
        %v914 = vunpack.c.0.s8 %v913
        %v915 = vcvt.s32.f32 %v914
        %v916 = vmul.f32 %v915, -1e+18
        %vm917 = vcmask 64512
        %v919 = vsel %vm917, %v901, 0
        %vm921 = vcmask 1043456
        %v923 = vsel %vm921, %v909, 0
        %925 = vmatprep.subr.bf16.mxu0 0
        %926 = vmatpush1.bf16.msra.mxu0 %v923
        %927 = vmatprep.subr.bf16.mxu0 0
        %928 = vmatpush1.bf16.msra.mxu0 0
        %929 = vmatprep.subr.bf16.mxu0 0
        %930 = vmatpush1.bf16.msra.mxu0 0
        %931 = vmatprep.subr.bf16.mxu0 0
        %932 = vmatpush1.bf16.msra.mxu0 0
        %933 = vmatprep.subr.bf16.mxu0 0
        %934 = vmatpush1.bf16.msra.mxu0 0
        %935 = vmatprep.subr.bf16.mxu0 0
        %936 = vmatpush1.bf16.msra.mxu0 0
        %937 = vmatprep.subr.bf16.mxu0 0
        %938 = vmatpush1.bf16.msra.mxu0 0
        %939 = vmatprep.subr.bf16.mxu0 0
        %940 = vmatpush1.bf16.msra.mxu0 0
        %941 = vmatprep.subr.bf16.mxu0 0
        %942 = vmatpush1.bf16.msra.mxu0 0
        %943 = vmatprep.subr.bf16.mxu0 0
        %944 = vmatpush1.bf16.msra.mxu0 0
        %945 = vmatprep.subr.bf16.mxu0 0
        %946 = vmatpush1.bf16.msra.mxu0 0
        %947 = vmatprep.subr.bf16.mxu0 0
        %948 = vmatpush1.bf16.msra.mxu0 0
        %949 = vmatprep.subr.bf16.mxu0 0
        %950 = vmatpush1.bf16.msra.mxu0 0
        %951 = vmatprep.subr.bf16.mxu0 0
        %952 = vmatpush1.bf16.msra.mxu0 0
        %953 = vmatprep.subr.bf16.mxu0 0
        %954 = vmatpush1.bf16.msra.mxu0 0
        %955 = vmatprep.subr.bf16.mxu0 0
        %956 = vmatpush1.bf16.msra.mxu0 0
        %957 = vmatprep.mubr.bf16.mxu0 0
        %958 = vmatmul.mubr.bf16.gmra.mrb[0].mxu0 %v919
        %v959 = vpop.f32.mrb[0].mxu0
        %v960 = vadd.f32 %v916, %v959
        %v961 = vpop.f32.mrb[0].mxu0
        %v962 = vpop.f32.mrb[0].mxu0
        %v963 = vpop.f32.mrb[0].mxu0
        %964 = vdwg.mxu0
        %v966 = vsel %vm917, %v904, 0
        %v969 = vsel %vm921, %v910, 0
        %971 = vmatprep.subr.bf16.mxu0 0
        %972 = vmatpush1.bf16.msra.mxu0 %v969
        %973 = vmatprep.subr.bf16.mxu0 0
        %974 = vmatpush1.bf16.msra.mxu0 0
        %975 = vmatprep.subr.bf16.mxu0 0
        %976 = vmatpush1.bf16.msra.mxu0 0
        %977 = vmatprep.subr.bf16.mxu0 0
        %978 = vmatpush1.bf16.msra.mxu0 0
        %979 = vmatprep.subr.bf16.mxu0 0
        %980 = vmatpush1.bf16.msra.mxu0 0
        %981 = vmatprep.subr.bf16.mxu0 0
        %982 = vmatpush1.bf16.msra.mxu0 0
        %983 = vmatprep.subr.bf16.mxu0 0
        %984 = vmatpush1.bf16.msra.mxu0 0
        %985 = vmatprep.subr.bf16.mxu0 0
        %986 = vmatpush1.bf16.msra.mxu0 0
        %987 = vmatprep.subr.bf16.mxu0 0
        %988 = vmatpush1.bf16.msra.mxu0 0
        %989 = vmatprep.subr.bf16.mxu0 0
        %990 = vmatpush1.bf16.msra.mxu0 0
        %991 = vmatprep.subr.bf16.mxu0 0
        %992 = vmatpush1.bf16.msra.mxu0 0
        %993 = vmatprep.subr.bf16.mxu0 0
        %994 = vmatpush1.bf16.msra.mxu0 0
        %995 = vmatprep.subr.bf16.mxu0 0
        %996 = vmatpush1.bf16.msra.mxu0 0
        %997 = vmatprep.subr.bf16.mxu0 0
        %998 = vmatpush1.bf16.msra.mxu0 0
        %999 = vmatprep.subr.bf16.mxu0 0
        %1000 = vmatpush1.bf16.msra.mxu0 0
        %1001 = vmatprep.subr.bf16.mxu0 0
        %1002 = vmatpush1.bf16.msra.mxu0 0
        %1003 = vmatprep.mubr.bf16.mxu0 0
        %1004 = vmatmul.mubr.bf16.gmra.mrb[0].mxu0 %v966
        %v1005 = vpop.f32.mrb[0].mxu0
        %v1006 = vadd.f32 %v916, %v1005
        %v1007 = vpop.f32.mrb[0].mxu0
        %v1008 = vpop.f32.mrb[0].mxu0
        %v1009 = vpop.f32.mrb[0].mxu0
        %1010 = vdwg.mxu0
        %v1012 = vsel %vm917, %v906, 0
        %v1015 = vsel %vm921, %v911, 0
        %1017 = vmatprep.subr.bf16.mxu0 0
        %1018 = vmatpush1.bf16.msra.mxu0 %v1015
        %1019 = vmatprep.subr.bf16.mxu0 0
        %1020 = vmatpush1.bf16.msra.mxu0 0
        %1021 = vmatprep.subr.bf16.mxu0 0
        %1022 = vmatpush1.bf16.msra.mxu0 0
        %1023 = vmatprep.subr.bf16.mxu0 0
        %1024 = vmatpush1.bf16.msra.mxu0 0
        %1025 = vmatprep.subr.bf16.mxu0 0
        %1026 = vmatpush1.bf16.msra.mxu0 0
        %1027 = vmatprep.subr.bf16.mxu0 0
        %1028 = vmatpush1.bf16.msra.mxu0 0
        %1029 = vmatprep.subr.bf16.mxu0 0
        %1030 = vmatpush1.bf16.msra.mxu0 0
        %1031 = vmatprep.subr.bf16.mxu0 0
        %1032 = vmatpush1.bf16.msra.mxu0 0
        %1033 = vmatprep.subr.bf16.mxu0 0
        %1034 = vmatpush1.bf16.msra.mxu0 0
        %1035 = vmatprep.subr.bf16.mxu0 0
        %1036 = vmatpush1.bf16.msra.mxu0 0
        %1037 = vmatprep.subr.bf16.mxu0 0
        %1038 = vmatpush1.bf16.msra.mxu0 0
        %1039 = vmatprep.subr.bf16.mxu0 0
        %1040 = vmatpush1.bf16.msra.mxu0 0
        %1041 = vmatprep.subr.bf16.mxu0 0
        %1042 = vmatpush1.bf16.msra.mxu0 0
        %1043 = vmatprep.subr.bf16.mxu0 0
        %1044 = vmatpush1.bf16.msra.mxu0 0
        %1045 = vmatprep.subr.bf16.mxu0 0
        %1046 = vmatpush1.bf16.msra.mxu0 0
        %1047 = vmatprep.subr.bf16.mxu0 0
        %1048 = vmatpush1.bf16.msra.mxu0 0
        %1049 = vmatprep.mubr.bf16.mxu0 0
        %1050 = vmatmul.mubr.bf16.gmra.mrb[0].mxu0 %v1012
        %v1051 = vpop.f32.mrb[0].mxu0
        %v1052 = vadd.f32 %v916, %v1051
        %v1053 = vpop.f32.mrb[0].mxu0
        %v1054 = vpop.f32.mrb[0].mxu0
        %v1055 = vpop.f32.mrb[0].mxu0
        %1056 = vdwg.mxu0
        %v1058 = vsel %vm917, %v908, 0
        %v1061 = vsel %vm921, %v912, 0
        %1063 = vmatprep.subr.bf16.mxu0 0
        %1064 = vmatpush1.bf16.msra.mxu0 %v1061
        %1065 = vmatprep.subr.bf16.mxu0 0
        %1066 = vmatpush1.bf16.msra.mxu0 0
        %1067 = vmatprep.subr.bf16.mxu0 0
        %1068 = vmatpush1.bf16.msra.mxu0 0
        %1069 = vmatprep.subr.bf16.mxu0 0
        %1070 = vmatpush1.bf16.msra.mxu0 0
        %1071 = vmatprep.subr.bf16.mxu0 0
        %1072 = vmatpush1.bf16.msra.mxu0 0
        %1073 = vmatprep.subr.bf16.mxu0 0
        %1074 = vmatpush1.bf16.msra.mxu0 0
        %1075 = vmatprep.subr.bf16.mxu0 0
        %1076 = vmatpush1.bf16.msra.mxu0 0
        %1077 = vmatprep.subr.bf16.mxu0 0
        %1078 = vmatpush1.bf16.msra.mxu0 0
        %1079 = vmatprep.subr.bf16.mxu0 0
        %1080 = vmatpush1.bf16.msra.mxu0 0
        %1081 = vmatprep.subr.bf16.mxu0 0
        %1082 = vmatpush1.bf16.msra.mxu0 0
        %1083 = vmatprep.subr.bf16.mxu0 0
        %1084 = vmatpush1.bf16.msra.mxu0 0
        %1085 = vmatprep.subr.bf16.mxu0 0
        %1086 = vmatpush1.bf16.msra.mxu0 0
        %1087 = vmatprep.subr.bf16.mxu0 0
        %1088 = vmatpush1.bf16.msra.mxu0 0
        %1089 = vmatprep.subr.bf16.mxu0 0
        %1090 = vmatpush1.bf16.msra.mxu0 0
        %1091 = vmatprep.subr.bf16.mxu0 0
        %1092 = vmatpush1.bf16.msra.mxu0 0
        %1093 = vmatprep.subr.bf16.mxu0 0
        %1094 = vmatpush1.bf16.msra.mxu0 0
        %1095 = vmatprep.mubr.bf16.mxu0 0
        %1096 = vmatmul.mubr.bf16.gmra.mrb[0].mxu0 %v1058
        %v1097 = vpop.f32.mrb[0].mxu0
        %v1098 = vadd.f32 %v916, %v1097
        %v1099 = vpop.f32.mrb[0].mxu0
        %v1100 = vpop.f32.mrb[0].mxu0
        %v1101 = vpop.f32.mrb[0].mxu0
        %1102 = vdwg.mxu0
        %v1103 = vsel %vm917, %v960, -inf
        %1104 = vmax.xlane.f32.xlu0 %v1103
        %v1105 = vpop.xlane.xlu0 %1104
        %v1106 = vsel %vm917, %v1006, -inf
        %1107 = vmax.xlane.f32.xlu0 %v1106
        %v1108 = vpop.xlane.xlu0 %1107
        %v1109 = vsel %vm917, %v1052, -inf
        %1110 = vmax.xlane.f32.xlu0 %v1109
        %v1111 = vpop.xlane.xlu0 %1110
        %v1112 = vsel %vm917, %v1098, -inf
        %1113 = vmax.xlane.f32.xlu0 %v1112
        %v1114 = vpop.xlane.xlu0 %1113
        %v1115 = vsub.f32 %v960, %v1105
        %v1116 = vsub.f32 %v1006, %v1108
        %v1117 = vsub.f32 %v1052, %v1111
        %v1118 = vsub.f32 %v1098, %v1114
        %v1119 = vmul.f32 %v1115, 1.442695
        %v1120 = vpow.pop %v1119
        %v1121 = vmul.f32 %v1116, 1.442695
        %v1122 = vpow.pop %v1121
        %v1123 = vmul.f32 %v1117, 1.442695
        %v1124 = vpow.pop %v1123
        %v1125 = vmul.f32 %v1118, 1.442695
        %v1126 = vpow.pop %v1125
        %v1127 = vsel %vm917, %v1120, 0.0
        %1128 = vadd.xlane.f32.xlu0 %v1127
        %v1129 = vpop.xlane.xlu0 %1128
        %v1130 = vsel %vm917, %v1122, 0.0
        %1131 = vadd.xlane.f32.xlu0 %v1130
        %v1132 = vpop.xlane.xlu0 %1131
        %v1133 = vsel %vm917, %v1124, 0.0
        %1134 = vadd.xlane.f32.xlu0 %v1133
        %v1135 = vpop.xlane.xlu0 %1134
        %v1136 = vsel %vm917, %v1126, 0.0
        %1137 = vadd.xlane.f32.xlu0 %v1136
        %v1138 = vpop.xlane.xlu0 %1137
        %v1139 = vrcp.pop %v1129
        %v1140 = vrcp.pop %v1132
        %v1141 = vrcp.pop %v1135
        %v1142 = vrcp.pop %v1138
        %v1143 = vmul.f32 %v1120, %v1139
        %v1144 = vmul.f32 %v1122, %v1140
        %v1145 = vmul.f32 %v1124, %v1141
        %v1146 = vmul.f32 %v1126, %v1142
        %1147 = vst.msk [vmem:[%s615] sm:$0xff] %vm917, %v1143
        %1148 = vst.msk [vmem:[%s615 + $0x8] sm:$0xff] %vm917, %v1144
        %1149 = vst.msk [vmem:[%s615 + $0x10] sm:$0xff] %vm917, %v1145
        %1150 = vst.msk [vmem:[%s615 + $0x18] sm:$0xff] %vm917, %v1146
        %v1151 = vpack.c.bf16 %v1143, %v1143
        %v1152 = vpack.c.bf16 %v1144, %v1144
        %v1153 = vpack.c.bf16 %v1145, %v1145
        %v1154 = vpack.c.bf16 %v1146, %v1146
        %v1155 = vld [vmem:[#allocation3] sm:$0xf]
        %v1156 = vld [vmem:[#allocation3 + $0x4] sm:$0xf]
        %v1157 = vld [vmem:[#allocation3 + $0x8] sm:$0xf]
        %v1158 = vld [vmem:[#allocation3 + $0xc] sm:$0xf]
        %v1160 = vsel %vm917, %v1151, 0
        %v1163 = vsel %vm921, %v1155, 0
        %1165 = vmatprep.subr.bf16.mxu0 0
        %1166 = vmatpush1.bf16.msra.mxu0 %v1163
        %1167 = vmatprep.subr.bf16.mxu0 0
        %1168 = vmatpush1.bf16.msra.mxu0 0
        %1169 = vmatprep.subr.bf16.mxu0 0
        %1170 = vmatpush1.bf16.msra.mxu0 0
        %1171 = vmatprep.subr.bf16.mxu0 0
        %1172 = vmatpush1.bf16.msra.mxu0 0
        %1173 = vmatprep.subr.bf16.mxu0 0
        %1174 = vmatpush1.bf16.msra.mxu0 0
        %1175 = vmatprep.subr.bf16.mxu0 0
        %1176 = vmatpush1.bf16.msra.mxu0 0
        %1177 = vmatprep.subr.bf16.mxu0 0
        %1178 = vmatpush1.bf16.msra.mxu0 0
        %1179 = vmatprep.subr.bf16.mxu0 0
        %1180 = vmatpush1.bf16.msra.mxu0 0
        %1181 = vmatprep.subr.bf16.mxu0 0
        %1182 = vmatpush1.bf16.msra.mxu0 0
        %1183 = vmatprep.subr.bf16.mxu0 0
        %1184 = vmatpush1.bf16.msra.mxu0 0
        %1185 = vmatprep.subr.bf16.mxu0 0
        %1186 = vmatpush1.bf16.msra.mxu0 0
        %1187 = vmatprep.subr.bf16.mxu0 0
        %1188 = vmatpush1.bf16.msra.mxu0 0
        %1189 = vmatprep.subr.bf16.mxu0 0
        %1190 = vmatpush1.bf16.msra.mxu0 0
        %1191 = vmatprep.subr.bf16.mxu0 0
        %1192 = vmatpush1.bf16.msra.mxu0 0
        %1193 = vmatprep.subr.bf16.mxu0 0
        %1194 = vmatpush1.bf16.msra.mxu0 0
        %1195 = vmatprep.subr.bf16.mxu0 0
        %1196 = vmatpush1.bf16.msra.mxu0 0
        %1197 = vmatprep.mubr.bf16.mxu0 0
        %1198 = vmatmul.mubr.bf16.gmra.mrb[0].mxu0 %v1160
        %v1199 = vpop.f32.mrb[0].mxu0
        %v1200 = vadd.f32 0.0, %v1199
        %v1201 = vpop.f32.mrb[0].mxu0
        %v1202 = vpop.f32.mrb[0].mxu0
        %v1203 = vpop.f32.mrb[0].mxu0
        %1204 = vdwg.mxu0
        %v1206 = vsel %vm917, %v1152, 0
        %v1209 = vsel %vm921, %v1156, 0
        %1211 = vmatprep.subr.bf16.mxu0 0
        %1212 = vmatpush1.bf16.msra.mxu0 %v1209
        %1213 = vmatprep.subr.bf16.mxu0 0
        %1214 = vmatpush1.bf16.msra.mxu0 0
        %1215 = vmatprep.subr.bf16.mxu0 0
        %1216 = vmatpush1.bf16.msra.mxu0 0
        %1217 = vmatprep.subr.bf16.mxu0 0
        %1218 = vmatpush1.bf16.msra.mxu0 0
        %1219 = vmatprep.subr.bf16.mxu0 0
        %1220 = vmatpush1.bf16.msra.mxu0 0
        %1221 = vmatprep.subr.bf16.mxu0 0
        %1222 = vmatpush1.bf16.msra.mxu0 0
        %1223 = vmatprep.subr.bf16.mxu0 0
        %1224 = vmatpush1.bf16.msra.mxu0 0
        %1225 = vmatprep.subr.bf16.mxu0 0
        %1226 = vmatpush1.bf16.msra.mxu0 0
        %1227 = vmatprep.subr.bf16.mxu0 0
        %1228 = vmatpush1.bf16.msra.mxu0 0
        %1229 = vmatprep.subr.bf16.mxu0 0
        %1230 = vmatpush1.bf16.msra.mxu0 0
        %1231 = vmatprep.subr.bf16.mxu0 0
        %1232 = vmatpush1.bf16.msra.mxu0 0
        %1233 = vmatprep.subr.bf16.mxu0 0
        %1234 = vmatpush1.bf16.msra.mxu0 0
        %1235 = vmatprep.subr.bf16.mxu0 0
        %1236 = vmatpush1.bf16.msra.mxu0 0
        %1237 = vmatprep.subr.bf16.mxu0 0
        %1238 = vmatpush1.bf16.msra.mxu0 0
        %1239 = vmatprep.subr.bf16.mxu0 0
        %1240 = vmatpush1.bf16.msra.mxu0 0
        %1241 = vmatprep.subr.bf16.mxu0 0
        %1242 = vmatpush1.bf16.msra.mxu0 0
        %1243 = vmatprep.mubr.bf16.mxu0 0
        %1244 = vmatmul.mubr.bf16.gmra.mrb[0].mxu0 %v1206
        %v1245 = vpop.f32.mrb[0].mxu0
        %v1246 = vadd.f32 0.0, %v1245
        %v1247 = vpop.f32.mrb[0].mxu0
        %v1248 = vpop.f32.mrb[0].mxu0
        %v1249 = vpop.f32.mrb[0].mxu0
        %1250 = vdwg.mxu0
        %v1252 = vsel %vm917, %v1153, 0
        %v1255 = vsel %vm921, %v1157, 0
        %1257 = vmatprep.subr.bf16.mxu0 0
        %1258 = vmatpush1.bf16.msra.mxu0 %v1255
        %1259 = vmatprep.subr.bf16.mxu0 0
        %1260 = vmatpush1.bf16.msra.mxu0 0
        %1261 = vmatprep.subr.bf16.mxu0 0
        %1262 = vmatpush1.bf16.msra.mxu0 0
        %1263 = vmatprep.subr.bf16.mxu0 0
        %1264 = vmatpush1.bf16.msra.mxu0 0
        %1265 = vmatprep.subr.bf16.mxu0 0
        %1266 = vmatpush1.bf16.msra.mxu0 0
        %1267 = vmatprep.subr.bf16.mxu0 0
        %1268 = vmatpush1.bf16.msra.mxu0 0
        %1269 = vmatprep.subr.bf16.mxu0 0
        %1270 = vmatpush1.bf16.msra.mxu0 0
        %1271 = vmatprep.subr.bf16.mxu0 0
        %1272 = vmatpush1.bf16.msra.mxu0 0
        %1273 = vmatprep.subr.bf16.mxu0 0
        %1274 = vmatpush1.bf16.msra.mxu0 0
        %1275 = vmatprep.subr.bf16.mxu0 0
        %1276 = vmatpush1.bf16.msra.mxu0 0
        %1277 = vmatprep.subr.bf16.mxu0 0
        %1278 = vmatpush1.bf16.msra.mxu0 0
        %1279 = vmatprep.subr.bf16.mxu0 0
        %1280 = vmatpush1.bf16.msra.mxu0 0
        %1281 = vmatprep.subr.bf16.mxu0 0
        %1282 = vmatpush1.bf16.msra.mxu0 0
        %1283 = vmatprep.subr.bf16.mxu0 0
        %1284 = vmatpush1.bf16.msra.mxu0 0
        %1285 = vmatprep.subr.bf16.mxu0 0
        %1286 = vmatpush1.bf16.msra.mxu0 0
        %1287 = vmatprep.subr.bf16.mxu0 0
        %1288 = vmatpush1.bf16.msra.mxu0 0
        %1289 = vmatprep.mubr.bf16.mxu0 0
        %1290 = vmatmul.mubr.bf16.gmra.mrb[0].mxu0 %v1252
        %v1291 = vpop.f32.mrb[0].mxu0
        %v1292 = vadd.f32 0.0, %v1291
        %v1293 = vpop.f32.mrb[0].mxu0
        %v1294 = vpop.f32.mrb[0].mxu0
        %v1295 = vpop.f32.mrb[0].mxu0
        %1296 = vdwg.mxu0
        %v1298 = vsel %vm917, %v1154, 0
        %v1301 = vsel %vm921, %v1158, 0
        %1303 = vmatprep.subr.bf16.mxu0 0
        %1304 = vmatpush1.bf16.msra.mxu0 %v1301
        %1305 = vmatprep.subr.bf16.mxu0 0
        %1306 = vmatpush1.bf16.msra.mxu0 0
        %1307 = vmatprep.subr.bf16.mxu0 0
        %1308 = vmatpush1.bf16.msra.mxu0 0
        %1309 = vmatprep.subr.bf16.mxu0 0
        %1310 = vmatpush1.bf16.msra.mxu0 0
        %1311 = vmatprep.subr.bf16.mxu0 0
        %1312 = vmatpush1.bf16.msra.mxu0 0
        %1313 = vmatprep.subr.bf16.mxu0 0
        %1314 = vmatpush1.bf16.msra.mxu0 0
        %1315 = vmatprep.subr.bf16.mxu0 0
        %1316 = vmatpush1.bf16.msra.mxu0 0
        %1317 = vmatprep.subr.bf16.mxu0 0
        %1318 = vmatpush1.bf16.msra.mxu0 0
        %1319 = vmatprep.subr.bf16.mxu0 0
        %1320 = vmatpush1.bf16.msra.mxu0 0
        %1321 = vmatprep.subr.bf16.mxu0 0
        %1322 = vmatpush1.bf16.msra.mxu0 0
        %1323 = vmatprep.subr.bf16.mxu0 0
        %1324 = vmatpush1.bf16.msra.mxu0 0
        %1325 = vmatprep.subr.bf16.mxu0 0
        %1326 = vmatpush1.bf16.msra.mxu0 0
        %1327 = vmatprep.subr.bf16.mxu0 0
        %1328 = vmatpush1.bf16.msra.mxu0 0
        %1329 = vmatprep.subr.bf16.mxu0 0
        %1330 = vmatpush1.bf16.msra.mxu0 0
        %1331 = vmatprep.subr.bf16.mxu0 0
        %1332 = vmatpush1.bf16.msra.mxu0 0
        %1333 = vmatprep.subr.bf16.mxu0 0
        %1334 = vmatpush1.bf16.msra.mxu0 0
        %1335 = vmatprep.mubr.bf16.mxu0 0
        %1336 = vmatmul.mubr.bf16.gmra.mrb[0].mxu0 %v1298
        %v1337 = vpop.f32.mrb[0].mxu0
        %v1338 = vadd.f32 0.0, %v1337
        %v1339 = vpop.f32.mrb[0].mxu0
        %v1340 = vpop.f32.mrb[0].mxu0
        %v1341 = vpop.f32.mrb[0].mxu0
        %1342 = vdwg.mxu0
        %1344 = vrot.lane.b32.xlu0 %v1246, 8
        %v1345 = vpop.permute.xlu0 %1344
        %1348 = vrot.lane.b32.xlu0 %v1292, 16
        %v1349 = vpop.permute.xlu0 %1348
        %1352 = vrot.lane.b32.xlu0 %v1338, 24
        %v1353 = vpop.permute.xlu0 %1352
        %v1355 = vsel %vm917, %v1200, %v1345
        %vm1356 = vcmask 130048
        %v1357 = vsel %vm1356, %v1355, %v1349
        %vm1358 = vcmask 195584
        %v1359 = vsel %vm1358, %v1357, %v1353
        %v1360 = vpack.c.bf16 %v1359, %v1359
        %v1361 = vld [vmem:[%s10] sm:$0xf]
        %v1362 = vld [vmem:[%s10 + $0x4] sm:$0xf]
        %v1363 = vld [vmem:[%s10 + $0x8] sm:$0xf]
        %v1364 = vld [vmem:[%s10 + $0xc] sm:$0xf]
        %v1365 = vld [vmem:[%s11] sm:$0x1]
        %v1367 = vlaneseq
        %v1368 = vshrl.u32 %v1367, 7
        %v1369 = vsub.s32 0, %v1368
        %v1370 = vrot.slane %v1365, %v1369
        %v1376 = vunpack.c.l.b16 %v1361
        %v1377 = vunpack.c.l.b16 %v1362
        %v1378 = vunpack.c.l.b16 %v1363
        %v1379 = vunpack.c.l.b16 %v1364
        %v1380 = vpack.c.b16 %v1377, %v1376
        %v1381 = vpack.c.b16 %v1379, %v1378
        %v1385 = vsel %vm857, %v1360, 0
        %1387 = vmatprep.subr.bf16.mxu0 0
        %1388 = vmatpush1.bf16.msra.mxu0 %v1380
        %1389 = vmatprep.subr.bf16.mxu0 0
        %1390 = vmatpush1.bf16.msra.mxu0 %v1381
        %1391 = vmatprep.subr.bf16.mxu0 0
        %1392 = vmatpush1.bf16.msra.mxu0 0
        %1393 = vmatprep.subr.bf16.mxu0 0
        %1394 = vmatpush1.bf16.msra.mxu0 0
        %1395 = vmatprep.subr.bf16.mxu0 0
        %1396 = vmatpush1.bf16.msra.mxu0 0
        %1397 = vmatprep.subr.bf16.mxu0 0
        %1398 = vmatpush1.bf16.msra.mxu0 0
        %1399 = vmatprep.subr.bf16.mxu0 0
        %1400 = vmatpush1.bf16.msra.mxu0 0
        %1401 = vmatprep.subr.bf16.mxu0 0
        %1402 = vmatpush1.bf16.msra.mxu0 0
        %1403 = vmatprep.subr.bf16.mxu0 0
        %1404 = vmatpush1.bf16.msra.mxu0 0
        %1405 = vmatprep.subr.bf16.mxu0 0
        %1406 = vmatpush1.bf16.msra.mxu0 0
        %1407 = vmatprep.subr.bf16.mxu0 0
        %1408 = vmatpush1.bf16.msra.mxu0 0
        %1409 = vmatprep.subr.bf16.mxu0 0
        %1410 = vmatpush1.bf16.msra.mxu0 0
        %1411 = vmatprep.subr.bf16.mxu0 0
        %1412 = vmatpush1.bf16.msra.mxu0 0
        %1413 = vmatprep.subr.bf16.mxu0 0
        %1414 = vmatpush1.bf16.msra.mxu0 0
        %1415 = vmatprep.subr.bf16.mxu0 0
        %1416 = vmatpush1.bf16.msra.mxu0 0
        %1417 = vmatprep.subr.bf16.mxu0 0
        %1418 = vmatpush1.bf16.msra.mxu0 0
        %1419 = vmatprep.mubr.bf16.mxu0 0
        %1420 = vmatmul.mubr.bf16.gmra.mrb[0].mxu0 %v1385
        %v1421 = vpop.f32.mrb[0].mxu0
        %v1422 = vadd.f32 %v1370, %v1421
        %v1423 = vpop.f32.mrb[0].mxu0
        %v1424 = vpop.f32.mrb[0].mxu0
        %v1425 = vpop.f32.mrb[0].mxu0
        %1426 = vdwg.mxu0
        %1427 = vst.msk [vmem:[%s609] sm:$0xff] %vm857, %v1422
        %s1428 = sand.u32 %s334, 1
        %s1429 = scalar_lea.sflag [#allocation6], %s1428
        %s1430 = sand.u32 %s334, 1
        %s1431 = smul.addr %s1430, 8
        %s1432 = scalar_lea.vmem [#allocation15], %s1431
        %s1433 = sand.u32 %s362, 1
        %s1434 = sand.u32 %s362, 1
        %s1435 = smul.addr %s1434, 32
        %s1436 = scalar_lea.vmem [#allocation16], %s1435
        // Predicated region
        $region97: #{tpu_custom_call.1} parent=67 // pred_check
          %p1437 = pneg %p344
        $region98: #{tpu_custom_call.1} parent=67 // pred_check_branch
          %1439 = sbr.rel (%p1437) target = $region100
        $region99: #{tpu_custom_call.1} parent=67 // pred_region
          %s1441 = ssub.s32 128, 128
          %1442 = vsyncadd %s1429, %s1441
          %s1443 = smul.addr %s40, 2
          %s1444 = sadd.s32 %s41, %s1443
          %s1445 = smul.addr %s1444, 128
          %s1446 = scalar_lea.hbm %s12, %s1445
          %s1448 = sshll.u32 %s1432, 4
          %s1449 = int_to_ptr.vmem [resolvable:$true] %s1448
          %1451 = dma.vmem_to_hbm [thread:$0]  %s1449, 128, %s1446, %s1429
        $region100: #{tpu_custom_call.1} parent=67 // pred_fallthru
          _
        // Predicated region
        $region101: #{tpu_custom_call.1} parent=67 // pred_check
          %p1452 = pneg %p372
        $region102: #{tpu_custom_call.1} parent=67 // pred_check_branch
          %1454 = sbr.rel (%p1452) target = $region104
        $region103: #{tpu_custom_call.1} parent=67 // pred_region
          %s1455 = smul.addr %s40, 8
          %s1456 = sadd.s32 %s41, %s1455
          %s1457 = smul.addr %s1456, 8
          %s1458 = scalar_lea.vmem %s13, %s1457
          // Predicated region
          $region105: #{tpu_custom_call.1} parent=103 // pred_check
            _
          $region106: #{tpu_custom_call.1} parent=103 // pred_check_branch
            %1460 = sbr.rel (0) target = $region108
          $region107: #{tpu_custom_call.1} parent=103 // pred_region
            // Predicated region
            $region109: #{tpu_custom_call.1} parent=107 // pred_check
              _
            $region110: #{tpu_custom_call.1} parent=107 // pred_check_branch
              %1462 = sbr.rel (0) target = $region112
            $region111: #{tpu_custom_call.1} parent=107 // pred_region
              // Predicated region
              $region124: #{tpu_custom_call.1} parent=111 // pred_check
                _
              $region125: #{tpu_custom_call.1} parent=111 // pred_check_branch
                %1483 = sbr.rel (0) target = $region127
              $region126: #{tpu_custom_call.1} parent=111 // pred_region
                loop: start=0, step=1, limit=1
                $region128: #{tpu_custom_call.1} parent=126 // loop_pre_header
                  _
                $region129: #{tpu_custom_call.1} parent=126 // loop_header
                  %s1485 = sphi 0, %s1489
                  %p1486 = scmp.ge.s32.totalorder %s1485, 1
                  %s1490 = sphi %s1436, %s1436
                  %s1491 = sphi %s1458, %s1458
                $region130: #{tpu_custom_call.1} parent=126 // loop_header_branch
                  %1488 = sbr.rel (%p1486) target = $region134
                $region131: #{tpu_custom_call.1} parent=126 // loop_body
                  %v1492 = vld [vmem:[%s1490] sm:$0xff]
                  %1493 = vst [vmem:[%s1491] sm:$0xff] %v1492
                  %v1494 = vld [vmem:[%s1490 + $0x8] sm:$0xff]
                  %1495 = vst [vmem:[%s1491 + $0x10] sm:$0xff] %v1494
                  %v1496 = vld [vmem:[%s1490 + $0x10] sm:$0xff]
                  %1497 = vst [vmem:[%s1491 + $0x20] sm:$0xff] %v1496
                  %v1498 = vld [vmem:[%s1490 + $0x18] sm:$0xff]
                  %1499 = vst [vmem:[%s1491 + $0x30] sm:$0xff] %v1498
                $region132: #{tpu_custom_call.1} parent=126 // loop_footer
                  %s1489 = sadd.s32 1, %s1485
                $region133: #{tpu_custom_call.1} parent=126 // loop_footer_branch
                  %1484 = sbr.rel target = $region129
                $region134: #{tpu_custom_call.1} parent=126 // loop_exit
                  _
              $region127: #{tpu_custom_call.1} parent=111 // pred_fallthru
                _
              // Predicated region
              $region135: #{tpu_custom_call.1} parent=111 // pred_check
                _
              $region136: #{tpu_custom_call.1} parent=111 // pred_check_branch
                %1501 = sbr.rel target = $region138
              $region137: #{tpu_custom_call.1} parent=111 // pred_region
                _
              $region138: #{tpu_custom_call.1} parent=111 // pred_fallthru
                _
            $region112: #{tpu_custom_call.1} parent=107 // pred_fallthru
              _
            // Predicated region
            $region113: #{tpu_custom_call.1} parent=107 // pred_check
              _
            $region114: #{tpu_custom_call.1} parent=107 // pred_check_branch
              %1464 = sbr.rel target = $region116
            $region115: #{tpu_custom_call.1} parent=107 // pred_region
              loop: start=0, step=1, limit=1
              $region117: #{tpu_custom_call.1} parent=115 // loop_pre_header
                _
              $region118: #{tpu_custom_call.1} parent=115 // loop_header
                %s1467 = sphi 0, %s1471
                %p1468 = scmp.ge.s32.totalorder %s1467, 1
                %s1472 = sphi %s1436, %s1436
                %s1473 = sphi %s1458, %s1458
              $region119: #{tpu_custom_call.1} parent=115 // loop_header_branch
                %1470 = sbr.rel (%p1468) target = $region123
              $region120: #{tpu_custom_call.1} parent=115 // loop_body
                %v1474 = vld [vmem:[%s1472] sm:$0xff]
                %1475 = vst [vmem:[%s1473] sm:$0xff] %v1474
                %v1476 = vld [vmem:[%s1472 + $0x8] sm:$0xff]
                %1477 = vst [vmem:[%s1473 + $0x10] sm:$0xff] %v1476
                %v1478 = vld [vmem:[%s1472 + $0x10] sm:$0xff]
                %1479 = vst [vmem:[%s1473 + $0x20] sm:$0xff] %v1478
                %v1480 = vld [vmem:[%s1472 + $0x18] sm:$0xff]
                %1481 = vst [vmem:[%s1473 + $0x30] sm:$0xff] %v1480
              $region121: #{tpu_custom_call.1} parent=115 // loop_footer
                %s1471 = sadd.s32 1, %s1467
              $region122: #{tpu_custom_call.1} parent=115 // loop_footer_branch
                %1466 = sbr.rel target = $region118
              $region123: #{tpu_custom_call.1} parent=115 // loop_exit
                _
            $region116: #{tpu_custom_call.1} parent=107 // pred_fallthru
              _
          $region108: #{tpu_custom_call.1} parent=103 // pred_fallthru
            _
          %1502 = vnop
        $region104: #{tpu_custom_call.1} parent=67 // pred_fallthru
          _
      $region68: #{tpu_custom_call.1} parent=5 // pred_fallthru
        _
      %p1503 = scmp.le.s32.totalorder 2, %s31
      // Predicated region
      $region139: #{tpu_custom_call.1} parent=5 // pred_check
        %p1504 = pneg %p1503
      $region140: #{tpu_custom_call.1} parent=5 // pred_check_branch
        %1506 = sbr.rel (%p1504) target = $region142
      $region141: #{tpu_custom_call.1} parent=5 // pred_region
        %s1507 = ssub.s32 %s31, 2
        // Predicated region
        $region143: #{tpu_custom_call.1} parent=141 // pred_check
          %p1508 = pneg %p350
        $region144: #{tpu_custom_call.1} parent=141 // pred_check_branch
          %1510 = sbr.rel (%p1508) target = $region146
        $region145: #{tpu_custom_call.1} parent=141 // pred_region
          %s1511 = sand.u32 %s335, 1
          %s1512 = scalar_lea.sflag [#allocation6], %s1511
          %s1513 = sand.u32 %s335, 1
          %s1514 = smul.addr %s1513, 8
          %s1515 = scalar_lea.vmem [#allocation15], %s1514
          %1516 = dma.done %s1512, 128
        $region146: #{tpu_custom_call.1} parent=141 // pred_fallthru
          _
        // Predicated region
        $region147: #{tpu_custom_call.1} parent=141 // pred_check
          %p1517 = pneg %p378
        $region148: #{tpu_custom_call.1} parent=141 // pred_check_branch
          %1519 = sbr.rel (%p1517) target = $region150
        $region149: #{tpu_custom_call.1} parent=141 // pred_region
          %s1520 = sand.u32 %s363, 1
          %s1521 = sand.u32 %s363, 1
          %s1522 = smul.addr %s1521, 32
          %s1523 = scalar_lea.vmem [#allocation16], %s1522
        $region150: #{tpu_custom_call.1} parent=141 // pred_fallthru
          _
      $region142: #{tpu_custom_call.1} parent=5 // pred_fallthru
        _
    $region6: #{tpu_custom_call.1} parent=1 // loop_footer
      %s35 = sadd.s32 1, %s31
    $region7: #{tpu_custom_call.1} parent=1 // loop_footer_branch
      %30 = sbr.rel target = $region3
    $region8: #{tpu_custom_call.1} parent=1 // loop_exit
      _
    %1524 = vsyncpa [#allocation5], 1
    %s1525 = scalar_lea.sflag [#allocation5], 1
    %1526 = vsyncpa %s1525, 1
    %1527 = vsyncpa [#allocation8], 1
    %s1528 = scalar_lea.sflag [#allocation8], 1
    %1529 = vsyncpa %s1528, 1
    %1530 = vsyncpa [#allocation11], 1
    %1531 = vsyncpa [#allocation14], 1
    %1532 = vsyncpa [#allocation6], 1
    %s1533 = scalar_lea.sflag [#allocation6], 1
    %1534 = vsyncpa %s1533, 1

</llo_original>
